<compile_context>
chip_gen: v7x
topology: tpu7x:2x2x1
jax: 0.10.0
libtpu: 0.0.40
codegen_flags: <defaults>
</compile_context>

<pallas_src>
import functools

import jax
import jax.numpy as jnp
from jax.experimental import pallas as pl
from jax.experimental.pallas import tpu as pltpu


# ----------------------------------------------------------------------------
# Fused kernel: stacked LSTM (time-unrolled, hoisted input matmul) + packed
# auxiliary-head MLP, all in one pallas_call.
# Gate order inside the kernel is [i, f, o, g] (repacked in the wrapper).
# ----------------------------------------------------------------------------
def _fused_forward_kernel(num_lstm_layers, num_aux_layers, T, H, x_ref, *refs):
    # x_ref : (T*Bp, D0)  time-major flattened input, batch padded to Bp
    # refs  : [wih_0, whh_0, b_0, ..., wih_{L-1}, whh_{L-1}, b_{L-1},
    #          w_aux_0, b_aux_0, ..., w_aux_{K-1}, b_aux_{K-1},
    #          out_ref, seq_scratch_a, seq_scratch_b]
    n_params = 3 * num_lstm_layers + 2 * num_aux_layers
    param_refs = refs[:n_params]
    out_ref = refs[n_params]
    seq_scratch = refs[n_params + 1:]          # two (T*Bp, H) VMEM buffers

    Bp = x_ref.shape[0] // T

    seq = x_ref[...]                           # (T*Bp, D_layer) current layer input
    h = None
    for l in range(num_lstm_layers):
        wih = param_refs[3 * l][...]           # (D_layer, 4H), gate order i,f,o,g
        whh = param_refs[3 * l + 1][...]       # (H, 4H)
        b = param_refs[3 * l + 2][...]         # (1, 4H)  (= b_ih + b_hh)

        # Hoisted input transform: one big MXU matmul covering all timesteps.
        pre = jnp.dot(seq, wih, preferred_element_type=jnp.float32) + b  # (T*Bp,4H)

        h = jnp.zeros((Bp, H), jnp.float32)
        c = jnp.zeros((Bp, H), jnp.float32)
        last_layer = l == num_lstm_layers - 1
        dst = seq_scratch[l % 2]

        for t in range(T):                     # static unroll over time
            gates = pre[t * Bp:(t + 1) * Bp, :] + jnp.dot(
                h, whh, preferred_element_type=jnp.float32)              # (Bp, 4H)
            # One wide sigmoid (i,f,o) + one tanh (g): 2 EUP pushes per step.
            sig = jax.nn.sigmoid(gates[:, 0:3 * H])
            g_g = jnp.tanh(gates[:, 3 * H:4 * H])
            i_g = sig[:, 0:H]
            f_g = sig[:, H:2 * H]
            o_g = sig[:, 2 * H:3 * H]
            c = f_g * c + i_g * g_g
            h = o_g * jnp.tanh(c)
            if not last_layer:
                dst[t * Bp:(t + 1) * Bp, :] = h
        if not last_layer:
            seq = dst[...]                     # (T*Bp, H): next layer's input

    # h == hidden[-1] of the PyTorch LSTM: (Bp, H)
    y = h
    for k in range(num_aux_layers):
        w = param_refs[3 * num_lstm_layers + 2 * k][...]
        bb = param_refs[3 * num_lstm_layers + 2 * k + 1][...]
        y = jnp.tanh(jnp.dot(y, w, preferred_element_type=jnp.float32) + bb)
    out_ref[...] = y                           # (Bp, num_aux * A), written once


# ----------------------------------------------------------------------------
# Wrapper: batch padding, time-major flattening, gate reorder, aux-head
# packing, one pallas_call.
# ----------------------------------------------------------------------------
def _reorder_gates(w, H):
    # [i | f | g | o] columns  ->  [i | f | o | g]
    return jnp.concatenate([w[:, :2 * H], w[:, 3 * H:4 * H], w[:, 2 * H:3 * H]],
                           axis=1)


def deep_mtl_tsmom_forward(x_btd, lstm_params, aux_params):
    """x_btd: (B, T, D) batch-first like PyTorch. Returns list of (B, A).

    lstm_params: list of (wih_t (D_in,4H), whh_t (H,4H), b (1,4H)) with PyTorch
                 gate order [i,f,g,o]; b must already equal b_ih + b_hh.
    aux_params:  list (per head) of (list_of_weights (in,out), list_of_biases).
    """
    B, T, D = x_btd.shape
    H = lstm_params[0][1].shape[0]
    num_lstm_layers = len(lstm_params)
    num_aux = len(aux_params)
    num_aux_layers = len(aux_params[0][0])
    A = aux_params[0][0][-1].shape[1]
    nA = num_aux * A

    # Pad batch to a f32 sublane multiple and flatten time-major to (T*Bp, D).
    Bp = max(8, ((B + 7) // 8) * 8)
    xp = jnp.zeros((Bp, T, D), jnp.float32).at[:B, :, :].set(x_btd)
    x2d = jnp.transpose(xp, (1, 0, 2)).reshape(T * Bp, D)

    # Repack LSTM gate columns [i,f,g,o] -> [i,f,o,g] (one-time, outside kernel).
    lstm_packed = [(_reorder_gates(wih_t, H), _reorder_gates(whh_t, H),
                    _reorder_gates(b, H)) for (wih_t, whh_t, b) in lstm_params]

    # Pack all auxiliary heads into one MLP: layer-0 weights concatenated along
    # the output axis, deeper layers block-diagonal (heads stay independent).
    packed_aux = []
    for k in range(num_aux_layers):
        ws = [aux_params[hh][0][k] for hh in range(num_aux)]
        bs = [aux_params[hh][1][k] for hh in range(num_aux)]
        if k == 0:
            wpk = jnp.concatenate(ws, axis=1)                  # (H, nA)
        else:
            wpk = jnp.zeros((nA, nA), jnp.float32)
            for hh in range(num_aux):
                wpk = wpk.at[hh * A:(hh + 1) * A,
                             hh * A:(hh + 1) * A].set(ws[hh])  # block-diagonal
        bpk = jnp.concatenate(bs, axis=1)                      # (1, nA)
        packed_aux.append((wpk, bpk))

    args = [x2d]
    for (wih_t, whh_t, b) in lstm_packed:
        args += [wih_t, whh_t, b]
    for (w, b) in packed_aux:
        args += [w, b]

    vmem = pl.BlockSpec(memory_space=pltpu.MemorySpace.VMEM)
    out = pl.pallas_call(
        functools.partial(_fused_forward_kernel, num_lstm_layers,
                          num_aux_layers, T, H),
        out_shape=jax.ShapeDtypeStruct((Bp, nA), jnp.float32),
        in_specs=[vmem] * len(args),
        out_specs=vmem,
        scratch_shapes=[pltpu.VMEM((T * Bp, H), jnp.float32),
                        pltpu.VMEM((T * Bp, H), jnp.float32)],
    )(*args)

    out = out[:B]
    return [out[:, hh * A:(hh + 1) * A] for hh in range(num_aux)]


# ----------------------------------------------------------------------------
# Deterministic parameter initialization (synthetic; mirrors the shapes that
# nn.LSTM / nn.Linear would create).  NOTE: when importing real nn.LSTM
# weights, the per-layer bias must be b_ih + b_hh, gate order [i,f,g,o].
# ----------------------------------------------------------------------------
def init_params(key, input_dim, hidden_dim, lstm_num_layers,
                num_assets, aux_num_layers, num_auxiliary):
    lstm_params = []
    for l in range(lstm_num_layers):
        d_in = input_dim if l == 0 else hidden_dim
        key, k1, k2, k3 = jax.random.split(key, 4)
        wih_t = jax.random.normal(k1, (d_in, 4 * hidden_dim), jnp.float32) * 0.1
        whh_t = jax.random.normal(k2, (hidden_dim, 4 * hidden_dim), jnp.float32) * 0.1
        b = jax.random.normal(k3, (1, 4 * hidden_dim), jnp.float32) * 0.1
        lstm_params.append((wih_t, whh_t, b))

    # AuxiliaryNetwork dims: Linear(H,A) then (aux_num_layers-1) x Linear(A,A)
    dims = [(hidden_dim, num_assets)]
    if aux_num_layers > 1:
        dims += [(num_assets, num_assets)] * (aux_num_layers - 1)

    aux_params = []
    for _ in range(num_auxiliary):
        ws, bs = [], []
        for (di, do) in dims:
            key, k1, k2 = jax.random.split(key, 3)
            ws.append(jax.random.normal(k1, (di, do), jnp.float32) * 0.2)
            bs.append(jax.random.normal(k2, (1, do), jnp.float32) * 0.1)
        aux_params.append((ws, bs))
    return lstm_params, aux_params


# ----------------------------------------------------------------------------
# Pure-JAX reference of the PyTorch forward (for correctness check).
# Uses the original [i,f,g,o] gate order.
# ----------------------------------------------------------------------------
def ref_forward(x_btd, lstm_params, aux_params):
    B, T, _ = x_btd.shape
    h_seq = x_btd
    for (wih_t, whh_t, b) in lstm_params:
        H = whh_t.shape[0]
        h = jnp.zeros((B, H), jnp.float32)
        c = jnp.zeros((B, H), jnp.float32)
        outs = []
        for t in range(T):
            gates = h_seq[:, t, :] @ wih_t + h @ whh_t + b
            i = jax.nn.sigmoid(gates[:, :H])
            f = jax.nn.sigmoid(gates[:, H:2 * H])
            g = jnp.tanh(gates[:, 2 * H:3 * H])
            o = jax.nn.sigmoid(gates[:, 3 * H:])
            c = f * c + i * g
            h = o * jnp.tanh(c)
            outs.append(h)
        h_seq = jnp.stack(outs, axis=1)
    hidden = h_seq[:, -1, :]
    results = []
    for ws, bs in aux_params:
        y = hidden
        for w, bb in zip(ws, bs):
            y = jnp.tanh(y @ w + bb)
        results.append(y)
    return results


if __name__ == "__main__":
    # Small shapes consistent with DeepMtlTsmom(num_features=4, num_assets=4,
    # input_dim=4, lstm_shared_hidden_dim=32, lstm_shared_num_layers=2,
    # auxiliary_network_num_layers=3, num_auxiliary=2)
    B, T = 2, 8
    input_dim = 4
    hidden_dim = 32
    lstm_num_layers = 2
    num_assets = 4
    aux_num_layers = 3
    num_auxiliary = 2

    key = jax.random.PRNGKey(0)
    key, kx, kp = jax.random.split(key, 3)
    x = jax.random.normal(kx, (B, T, input_dim), jnp.float32)  # batch_first

    lstm_params, aux_params = init_params(
        kp, input_dim, hidden_dim, lstm_num_layers,
        num_assets, aux_num_layers, num_auxiliary)

    fwd = jax.jit(deep_mtl_tsmom_forward)
    outs = fwd(x, lstm_params, aux_params)
    outs = [jax.block_until_ready(o) for o in outs]

    refs = ref_forward(x, lstm_params, aux_params)
    for o, r in zip(outs, refs):
        assert o.shape == (B, num_assets)
        assert jnp.allclose(o, r, atol=1e-4, rtol=1e-4), "mismatch vs reference"

    print("KERNEL_OK")
</pallas_src>

<mosaic_0001>
module attributes {stable_mosaic.version = 11 : i64} {
  func.func @_fused_forward_kernel(%arg0: memref<64x4xf32, #tpu.memory_space<vmem>>, %arg1: memref<4x128xf32, #tpu.memory_space<vmem>>, %arg2: memref<32x128xf32, #tpu.memory_space<vmem>>, %arg3: memref<1x128xf32, #tpu.memory_space<vmem>>, %arg4: memref<32x128xf32, #tpu.memory_space<vmem>>, %arg5: memref<32x128xf32, #tpu.memory_space<vmem>>, %arg6: memref<1x128xf32, #tpu.memory_space<vmem>>, %arg7: memref<32x8xf32, #tpu.memory_space<vmem>>, %arg8: memref<1x8xf32, #tpu.memory_space<vmem>>, %arg9: memref<8x8xf32, #tpu.memory_space<vmem>>, %arg10: memref<1x8xf32, #tpu.memory_space<vmem>>, %arg11: memref<8x8xf32, #tpu.memory_space<vmem>>, %arg12: memref<1x8xf32, #tpu.memory_space<vmem>>, %arg13: memref<8x8xf32, #tpu.memory_space<vmem>>, %arg14: memref<64x32xf32, #tpu.memory_space<vmem>>, %arg15: memref<64x32xf32, #tpu.memory_space<vmem>>) attributes {dimension_semantics = [], scalar_prefetch = 0 : i64, scratch_operands = 2 : i64, tpu.core_type = #tpu.core_type<tc>} {
    %c0 = arith.constant 0 : index
    %c0_0 = arith.constant 0 : index
    %0 = vector.load %arg0[%c0, %c0_0] : memref<64x4xf32, #tpu.memory_space<vmem>>, vector<64x4xf32>
    %c0_1 = arith.constant 0 : index
    %c0_2 = arith.constant 0 : index
    %1 = vector.load %arg1[%c0_1, %c0_2] : memref<4x128xf32, #tpu.memory_space<vmem>>, vector<4x128xf32>
    %c0_3 = arith.constant 0 : index
    %c0_4 = arith.constant 0 : index
    %2 = vector.load %arg2[%c0_3, %c0_4] : memref<32x128xf32, #tpu.memory_space<vmem>>, vector<32x128xf32>
    %c0_5 = arith.constant 0 : index
    %c0_6 = arith.constant 0 : index
    %3 = vector.load %arg3[%c0_5, %c0_6] : memref<1x128xf32, #tpu.memory_space<vmem>>, vector<1x128xf32>
    %cst = arith.constant dense<0.000000e+00> : vector<64x128xf32>
    %4 = tpu.matmul %0, %1, %cst {dimension_numbers = #tpu.dot_dimension_numbers<[1], [0], [0], [1], [0, 0, 1, 1], [], []>} : vector<64x4xf32>, vector<4x128xf32>, vector<64x128xf32> -> vector<64x128xf32>
    %5 = vector.broadcast %3 : vector<1x128xf32> to vector<64x128xf32>
    %6 = arith.addf %4, %5 : vector<64x128xf32>
    %cst_7 = arith.constant 0.000000e+00 : f32
    %7 = vector.broadcast %cst_7 : f32 to vector<8x32xf32>
    %cst_8 = arith.constant 0.000000e+00 : f32
    %8 = vector.broadcast %cst_8 : f32 to vector<8x32xf32>
    %9 = vector.extract_strided_slice %6 {offsets = [0, 0], sizes = [8, 128], strides = [1, 1]} : vector<64x128xf32> to vector<8x128xf32>
    %cst_9 = arith.constant dense<0.000000e+00> : vector<8x128xf32>
    %10 = tpu.matmul %7, %2, %cst_9 {dimension_numbers = #tpu.dot_dimension_numbers<[1], [0], [0], [1], [0, 0, 1, 1], [], []>} : vector<8x32xf32>, vector<32x128xf32>, vector<8x128xf32> -> vector<8x128xf32>
    %11 = arith.addf %9, %10 : vector<8x128xf32>
    %12 = vector.extract_strided_slice %11 {offsets = [0, 0], sizes = [8, 96], strides = [1, 1]} : vector<8x128xf32> to vector<8x96xf32>
    %13 = arith.negf %12 : vector<8x96xf32>
    %14 = math.exp %13 : vector<8x96xf32>
    %cst_10 = arith.constant 1.000000e+00 : f32
    %15 = vector.broadcast %cst_10 : f32 to vector<8x96xf32>
    %16 = arith.addf %15, %14 : vector<8x96xf32>
    %17 = arith.divf %15, %16 : vector<8x96xf32>
    %18 = vector.extract_strided_slice %11 {offsets = [0, 96], sizes = [8, 32], strides = [1, 1]} : vector<8x128xf32> to vector<8x32xf32>
    %19 = math.tanh %18 : vector<8x32xf32>
    %20 = vector.extract_strided_slice %17 {offsets = [0, 0], sizes = [8, 32], strides = [1, 1]} : vector<8x96xf32> to vector<8x32xf32>
    %21 = vector.extract_strided_slice %17 {offsets = [0, 32], sizes = [8, 32], strides = [1, 1]} : vector<8x96xf32> to vector<8x32xf32>
    %22 = vector.extract_strided_slice %17 {offsets = [0, 64], sizes = [8, 32], strides = [1, 1]} : vector<8x96xf32> to vector<8x32xf32>
    %23 = arith.mulf %21, %8 : vector<8x32xf32>
    %24 = arith.mulf %20, %19 : vector<8x32xf32>
    %25 = arith.addf %23, %24 : vector<8x32xf32>
    %26 = math.tanh %25 : vector<8x32xf32>
    %27 = arith.mulf %22, %26 : vector<8x32xf32>
    %c0_11 = arith.constant 0 : index
    %c0_12 = arith.constant 0 : index
    %28 = vector.load %arg14[%c0_11, %c0_12] : memref<64x32xf32, #tpu.memory_space<vmem>>, vector<8x32xf32>
    tpu.vector_store %arg14[%c0_11, %c0_12], %27 {strides = array<i32>} : memref<64x32xf32, #tpu.memory_space<vmem>>, vector<8x32xf32>,
    %29 = vector.extract_strided_slice %6 {offsets = [8, 0], sizes = [8, 128], strides = [1, 1]} : vector<64x128xf32> to vector<8x128xf32>
    %cst_13 = arith.constant dense<0.000000e+00> : vector<8x128xf32>
    %30 = tpu.matmul %27, %2, %cst_13 {dimension_numbers = #tpu.dot_dimension_numbers<[1], [0], [0], [1], [0, 0, 1, 1], [], []>} : vector<8x32xf32>, vector<32x128xf32>, vector<8x128xf32> -> vector<8x128xf32>
    %31 = arith.addf %29, %30 : vector<8x128xf32>
    %32 = vector.extract_strided_slice %31 {offsets = [0, 0], sizes = [8, 96], strides = [1, 1]} : vector<8x128xf32> to vector<8x96xf32>
    %33 = arith.negf %32 : vector<8x96xf32>
    %34 = math.exp %33 : vector<8x96xf32>
    %cst_14 = arith.constant 1.000000e+00 : f32
    %35 = vector.broadcast %cst_14 : f32 to vector<8x96xf32>
    %36 = arith.addf %35, %34 : vector<8x96xf32>
    %37 = arith.divf %35, %36 : vector<8x96xf32>
    %38 = vector.extract_strided_slice %31 {offsets = [0, 96], sizes = [8, 32], strides = [1, 1]} : vector<8x128xf32> to vector<8x32xf32>
    %39 = math.tanh %38 : vector<8x32xf32>
    %40 = vector.extract_strided_slice %37 {offsets = [0, 0], sizes = [8, 32], strides = [1, 1]} : vector<8x96xf32> to vector<8x32xf32>
    %41 = vector.extract_strided_slice %37 {offsets = [0, 32], sizes = [8, 32], strides = [1, 1]} : vector<8x96xf32> to vector<8x32xf32>
    %42 = vector.extract_strided_slice %37 {offsets = [0, 64], sizes = [8, 32], strides = [1, 1]} : vector<8x96xf32> to vector<8x32xf32>
    %43 = arith.mulf %41, %25 : vector<8x32xf32>
    %44 = arith.mulf %40, %39 : vector<8x32xf32>
    %45 = arith.addf %43, %44 : vector<8x32xf32>
    %46 = math.tanh %45 : vector<8x32xf32>
    %47 = arith.mulf %42, %46 : vector<8x32xf32>
    %c8 = arith.constant 8 : index
    %c0_15 = arith.constant 0 : index
    %48 = vector.load %arg14[%c8, %c0_15] : memref<64x32xf32, #tpu.memory_space<vmem>>, vector<8x32xf32>
    tpu.vector_store %arg14[%c8, %c0_15], %47 {strides = array<i32>} : memref<64x32xf32, #tpu.memory_space<vmem>>, vector<8x32xf32>,
    %49 = vector.extract_strided_slice %6 {offsets = [16, 0], sizes = [8, 128], strides = [1, 1]} : vector<64x128xf32> to vector<8x128xf32>
    %cst_16 = arith.constant dense<0.000000e+00> : vector<8x128xf32>
    %50 = tpu.matmul %47, %2, %cst_16 {dimension_numbers = #tpu.dot_dimension_numbers<[1], [0], [0], [1], [0, 0, 1, 1], [], []>} : vector<8x32xf32>, vector<32x128xf32>, vector<8x128xf32> -> vector<8x128xf32>
    %51 = arith.addf %49, %50 : vector<8x128xf32>
    %52 = vector.extract_strided_slice %51 {offsets = [0, 0], sizes = [8, 96], strides = [1, 1]} : vector<8x128xf32> to vector<8x96xf32>
    %53 = arith.negf %52 : vector<8x96xf32>
    %54 = math.exp %53 : vector<8x96xf32>
    %cst_17 = arith.constant 1.000000e+00 : f32
    %55 = vector.broadcast %cst_17 : f32 to vector<8x96xf32>
    %56 = arith.addf %55, %54 : vector<8x96xf32>
    %57 = arith.divf %55, %56 : vector<8x96xf32>
    %58 = vector.extract_strided_slice %51 {offsets = [0, 96], sizes = [8, 32], strides = [1, 1]} : vector<8x128xf32> to vector<8x32xf32>
    %59 = math.tanh %58 : vector<8x32xf32>
    %60 = vector.extract_strided_slice %57 {offsets = [0, 0], sizes = [8, 32], strides = [1, 1]} : vector<8x96xf32> to vector<8x32xf32>
    %61 = vector.extract_strided_slice %57 {offsets = [0, 32], sizes = [8, 32], strides = [1, 1]} : vector<8x96xf32> to vector<8x32xf32>
    %62 = vector.extract_strided_slice %57 {offsets = [0, 64], sizes = [8, 32], strides = [1, 1]} : vector<8x96xf32> to vector<8x32xf32>
    %63 = arith.mulf %61, %45 : vector<8x32xf32>
    %64 = arith.mulf %60, %59 : vector<8x32xf32>
    %65 = arith.addf %63, %64 : vector<8x32xf32>
    %66 = math.tanh %65 : vector<8x32xf32>
    %67 = arith.mulf %62, %66 : vector<8x32xf32>
    %c16 = arith.constant 16 : index
    %c0_18 = arith.constant 0 : index
    %68 = vector.load %arg14[%c16, %c0_18] : memref<64x32xf32, #tpu.memory_space<vmem>>, vector<8x32xf32>
    tpu.vector_store %arg14[%c16, %c0_18], %67 {strides = array<i32>} : memref<64x32xf32, #tpu.memory_space<vmem>>, vector<8x32xf32>,
    %69 = vector.extract_strided_slice %6 {offsets = [24, 0], sizes = [8, 128], strides = [1, 1]} : vector<64x128xf32> to vector<8x128xf32>
    %cst_19 = arith.constant dense<0.000000e+00> : vector<8x128xf32>
    %70 = tpu.matmul %67, %2, %cst_19 {dimension_numbers = #tpu.dot_dimension_numbers<[1], [0], [0], [1], [0, 0, 1, 1], [], []>} : vector<8x32xf32>, vector<32x128xf32>, vector<8x128xf32> -> vector<8x128xf32>
    %71 = arith.addf %69, %70 : vector<8x128xf32>
    %72 = vector.extract_strided_slice %71 {offsets = [0, 0], sizes = [8, 96], strides = [1, 1]} : vector<8x128xf32> to vector<8x96xf32>
    %73 = arith.negf %72 : vector<8x96xf32>
    %74 = math.exp %73 : vector<8x96xf32>
    %cst_20 = arith.constant 1.000000e+00 : f32
    %75 = vector.broadcast %cst_20 : f32 to vector<8x96xf32>
    %76 = arith.addf %75, %74 : vector<8x96xf32>
    %77 = arith.divf %75, %76 : vector<8x96xf32>
    %78 = vector.extract_strided_slice %71 {offsets = [0, 96], sizes = [8, 32], strides = [1, 1]} : vector<8x128xf32> to vector<8x32xf32>
    %79 = math.tanh %78 : vector<8x32xf32>
    %80 = vector.extract_strided_slice %77 {offsets = [0, 0], sizes = [8, 32], strides = [1, 1]} : vector<8x96xf32> to vector<8x32xf32>
    %81 = vector.extract_strided_slice %77 {offsets = [0, 32], sizes = [8, 32], strides = [1, 1]} : vector<8x96xf32> to vector<8x32xf32>
    %82 = vector.extract_strided_slice %77 {offsets = [0, 64], sizes = [8, 32], strides = [1, 1]} : vector<8x96xf32> to vector<8x32xf32>
    %83 = arith.mulf %81, %65 : vector<8x32xf32>
    %84 = arith.mulf %80, %79 : vector<8x32xf32>
    %85 = arith.addf %83, %84 : vector<8x32xf32>
    %86 = math.tanh %85 : vector<8x32xf32>
    %87 = arith.mulf %82, %86 : vector<8x32xf32>
    %c24 = arith.constant 24 : index
    %c0_21 = arith.constant 0 : index
    %88 = vector.load %arg14[%c24, %c0_21] : memref<64x32xf32, #tpu.memory_space<vmem>>, vector<8x32xf32>
    tpu.vector_store %arg14[%c24, %c0_21], %87 {strides = array<i32>} : memref<64x32xf32, #tpu.memory_space<vmem>>, vector<8x32xf32>,
    %89 = vector.extract_strided_slice %6 {offsets = [32, 0], sizes = [8, 128], strides = [1, 1]} : vector<64x128xf32> to vector<8x128xf32>
    %cst_22 = arith.constant dense<0.000000e+00> : vector<8x128xf32>
    %90 = tpu.matmul %87, %2, %cst_22 {dimension_numbers = #tpu.dot_dimension_numbers<[1], [0], [0], [1], [0, 0, 1, 1], [], []>} : vector<8x32xf32>, vector<32x128xf32>, vector<8x128xf32> -> vector<8x128xf32>
    %91 = arith.addf %89, %90 : vector<8x128xf32>
    %92 = vector.extract_strided_slice %91 {offsets = [0, 0], sizes = [8, 96], strides = [1, 1]} : vector<8x128xf32> to vector<8x96xf32>
    %93 = arith.negf %92 : vector<8x96xf32>
    %94 = math.exp %93 : vector<8x96xf32>
    %cst_23 = arith.constant 1.000000e+00 : f32
    %95 = vector.broadcast %cst_23 : f32 to vector<8x96xf32>
    %96 = arith.addf %95, %94 : vector<8x96xf32>
    %97 = arith.divf %95, %96 : vector<8x96xf32>
    %98 = vector.extract_strided_slice %91 {offsets = [0, 96], sizes = [8, 32], strides = [1, 1]} : vector<8x128xf32> to vector<8x32xf32>
    %99 = math.tanh %98 : vector<8x32xf32>
    %100 = vector.extract_strided_slice %97 {offsets = [0, 0], sizes = [8, 32], strides = [1, 1]} : vector<8x96xf32> to vector<8x32xf32>
    %101 = vector.extract_strided_slice %97 {offsets = [0, 32], sizes = [8, 32], strides = [1, 1]} : vector<8x96xf32> to vector<8x32xf32>
    %102 = vector.extract_strided_slice %97 {offsets = [0, 64], sizes = [8, 32], strides = [1, 1]} : vector<8x96xf32> to vector<8x32xf32>
    %103 = arith.mulf %101, %85 : vector<8x32xf32>
    %104 = arith.mulf %100, %99 : vector<8x32xf32>
    %105 = arith.addf %103, %104 : vector<8x32xf32>
    %106 = math.tanh %105 : vector<8x32xf32>
    %107 = arith.mulf %102, %106 : vector<8x32xf32>
    %c32 = arith.constant 32 : index
    %c0_24 = arith.constant 0 : index
    %108 = vector.load %arg14[%c32, %c0_24] : memref<64x32xf32, #tpu.memory_space<vmem>>, vector<8x32xf32>
    tpu.vector_store %arg14[%c32, %c0_24], %107 {strides = array<i32>} : memref<64x32xf32, #tpu.memory_space<vmem>>, vector<8x32xf32>,
    %109 = vector.extract_strided_slice %6 {offsets = [40, 0], sizes = [8, 128], strides = [1, 1]} : vector<64x128xf32> to vector<8x128xf32>
    %cst_25 = arith.constant dense<0.000000e+00> : vector<8x128xf32>
    %110 = tpu.matmul %107, %2, %cst_25 {dimension_numbers = #tpu.dot_dimension_numbers<[1], [0], [0], [1], [0, 0, 1, 1], [], []>} : vector<8x32xf32>, vector<32x128xf32>, vector<8x128xf32> -> vector<8x128xf32>
    %111 = arith.addf %109, %110 : vector<8x128xf32>
    %112 = vector.extract_strided_slice %111 {offsets = [0, 0], sizes = [8, 96], strides = [1, 1]} : vector<8x128xf32> to vector<8x96xf32>
    %113 = arith.negf %112 : vector<8x96xf32>
    %114 = math.exp %113 : vector<8x96xf32>
    %cst_26 = arith.constant 1.000000e+00 : f32
    %115 = vector.broadcast %cst_26 : f32 to vector<8x96xf32>
    %116 = arith.addf %115, %114 : vector<8x96xf32>
    %117 = arith.divf %115, %116 : vector<8x96xf32>
    %118 = vector.extract_strided_slice %111 {offsets = [0, 96], sizes = [8, 32], strides = [1, 1]} : vector<8x128xf32> to vector<8x32xf32>
    %119 = math.tanh %118 : vector<8x32xf32>
    %120 = vector.extract_strided_slice %117 {offsets = [0, 0], sizes = [8, 32], strides = [1, 1]} : vector<8x96xf32> to vector<8x32xf32>
    %121 = vector.extract_strided_slice %117 {offsets = [0, 32], sizes = [8, 32], strides = [1, 1]} : vector<8x96xf32> to vector<8x32xf32>
    %122 = vector.extract_strided_slice %117 {offsets = [0, 64], sizes = [8, 32], strides = [1, 1]} : vector<8x96xf32> to vector<8x32xf32>
    %123 = arith.mulf %121, %105 : vector<8x32xf32>
    %124 = arith.mulf %120, %119 : vector<8x32xf32>
    %125 = arith.addf %123, %124 : vector<8x32xf32>
    %126 = math.tanh %125 : vector<8x32xf32>
    %127 = arith.mulf %122, %126 : vector<8x32xf32>
    %c40 = arith.constant 40 : index
    %c0_27 = arith.constant 0 : index
    %128 = vector.load %arg14[%c40, %c0_27] : memref<64x32xf32, #tpu.memory_space<vmem>>, vector<8x32xf32>
    tpu.vector_store %arg14[%c40, %c0_27], %127 {strides = array<i32>} : memref<64x32xf32, #tpu.memory_space<vmem>>, vector<8x32xf32>,
    %129 = vector.extract_strided_slice %6 {offsets = [48, 0], sizes = [8, 128], strides = [1, 1]} : vector<64x128xf32> to vector<8x128xf32>
    %cst_28 = arith.constant dense<0.000000e+00> : vector<8x128xf32>
    %130 = tpu.matmul %127, %2, %cst_28 {dimension_numbers = #tpu.dot_dimension_numbers<[1], [0], [0], [1], [0, 0, 1, 1], [], []>} : vector<8x32xf32>, vector<32x128xf32>, vector<8x128xf32> -> vector<8x128xf32>
    %131 = arith.addf %129, %130 : vector<8x128xf32>
    %132 = vector.extract_strided_slice %131 {offsets = [0, 0], sizes = [8, 96], strides = [1, 1]} : vector<8x128xf32> to vector<8x96xf32>
    %133 = arith.negf %132 : vector<8x96xf32>
    %134 = math.exp %133 : vector<8x96xf32>
    %cst_29 = arith.constant 1.000000e+00 : f32
    %135 = vector.broadcast %cst_29 : f32 to vector<8x96xf32>
    %136 = arith.addf %135, %134 : vector<8x96xf32>
    %137 = arith.divf %135, %136 : vector<8x96xf32>
    %138 = vector.extract_strided_slice %131 {offsets = [0, 96], sizes = [8, 32], strides = [1, 1]} : vector<8x128xf32> to vector<8x32xf32>
    %139 = math.tanh %138 : vector<8x32xf32>
    %140 = vector.extract_strided_slice %137 {offsets = [0, 0], sizes = [8, 32], strides = [1, 1]} : vector<8x96xf32> to vector<8x32xf32>
    %141 = vector.extract_strided_slice %137 {offsets = [0, 32], sizes = [8, 32], strides = [1, 1]} : vector<8x96xf32> to vector<8x32xf32>
    %142 = vector.extract_strided_slice %137 {offsets = [0, 64], sizes = [8, 32], strides = [1, 1]} : vector<8x96xf32> to vector<8x32xf32>
    %143 = arith.mulf %141, %125 : vector<8x32xf32>
    %144 = arith.mulf %140, %139 : vector<8x32xf32>
    %145 = arith.addf %143, %144 : vector<8x32xf32>
    %146 = math.tanh %145 : vector<8x32xf32>
    %147 = arith.mulf %142, %146 : vector<8x32xf32>
    %c48 = arith.constant 48 : index
    %c0_30 = arith.constant 0 : index
    %148 = vector.load %arg14[%c48, %c0_30] : memref<64x32xf32, #tpu.memory_space<vmem>>, vector<8x32xf32>
    tpu.vector_store %arg14[%c48, %c0_30], %147 {strides = array<i32>} : memref<64x32xf32, #tpu.memory_space<vmem>>, vector<8x32xf32>,
    %149 = vector.extract_strided_slice %6 {offsets = [56, 0], sizes = [8, 128], strides = [1, 1]} : vector<64x128xf32> to vector<8x128xf32>
    %cst_31 = arith.constant dense<0.000000e+00> : vector<8x128xf32>
    %150 = tpu.matmul %147, %2, %cst_31 {dimension_numbers = #tpu.dot_dimension_numbers<[1], [0], [0], [1], [0, 0, 1, 1], [], []>} : vector<8x32xf32>, vector<32x128xf32>, vector<8x128xf32> -> vector<8x128xf32>
    %151 = arith.addf %149, %150 : vector<8x128xf32>
    %152 = vector.extract_strided_slice %151 {offsets = [0, 0], sizes = [8, 96], strides = [1, 1]} : vector<8x128xf32> to vector<8x96xf32>
    %153 = arith.negf %152 : vector<8x96xf32>
    %154 = math.exp %153 : vector<8x96xf32>
    %cst_32 = arith.constant 1.000000e+00 : f32
    %155 = vector.broadcast %cst_32 : f32 to vector<8x96xf32>
    %156 = arith.addf %155, %154 : vector<8x96xf32>
    %157 = arith.divf %155, %156 : vector<8x96xf32>
    %158 = vector.extract_strided_slice %151 {offsets = [0, 96], sizes = [8, 32], strides = [1, 1]} : vector<8x128xf32> to vector<8x32xf32>
    %159 = math.tanh %158 : vector<8x32xf32>
    %160 = vector.extract_strided_slice %157 {offsets = [0, 0], sizes = [8, 32], strides = [1, 1]} : vector<8x96xf32> to vector<8x32xf32>
    %161 = vector.extract_strided_slice %157 {offsets = [0, 32], sizes = [8, 32], strides = [1, 1]} : vector<8x96xf32> to vector<8x32xf32>
    %162 = vector.extract_strided_slice %157 {offsets = [0, 64], sizes = [8, 32], strides = [1, 1]} : vector<8x96xf32> to vector<8x32xf32>
    %163 = arith.mulf %161, %145 : vector<8x32xf32>
    %164 = arith.mulf %160, %159 : vector<8x32xf32>
    %165 = arith.addf %163, %164 : vector<8x32xf32>
    %166 = math.tanh %165 : vector<8x32xf32>
    %167 = arith.mulf %162, %166 : vector<8x32xf32>
    %c56 = arith.constant 56 : index
    %c0_33 = arith.constant 0 : index
    %168 = vector.load %arg14[%c56, %c0_33] : memref<64x32xf32, #tpu.memory_space<vmem>>, vector<8x32xf32>
    tpu.vector_store %arg14[%c56, %c0_33], %167 {strides = array<i32>} : memref<64x32xf32, #tpu.memory_space<vmem>>, vector<8x32xf32>,
    %c0_34 = arith.constant 0 : index
    %c0_35 = arith.constant 0 : index
    %169 = vector.load %arg14[%c0_34, %c0_35] : memref<64x32xf32, #tpu.memory_space<vmem>>, vector<64x32xf32>
    %c0_36 = arith.constant 0 : index
    %c0_37 = arith.constant 0 : index
    %170 = vector.load %arg4[%c0_36, %c0_37] : memref<32x128xf32, #tpu.memory_space<vmem>>, vector<32x128xf32>
    %c0_38 = arith.constant 0 : index
    %c0_39 = arith.constant 0 : index
    %171 = vector.load %arg5[%c0_38, %c0_39] : memref<32x128xf32, #tpu.memory_space<vmem>>, vector<32x128xf32>
    %c0_40 = arith.constant 0 : index
    %c0_41 = arith.constant 0 : index
    %172 = vector.load %arg6[%c0_40, %c0_41] : memref<1x128xf32, #tpu.memory_space<vmem>>, vector<1x128xf32>
    %cst_42 = arith.constant dense<0.000000e+00> : vector<64x128xf32>
    %173 = tpu.matmul %169, %170, %cst_42 {dimension_numbers = #tpu.dot_dimension_numbers<[1], [0], [0], [1], [0, 0, 1, 1], [], []>} : vector<64x32xf32>, vector<32x128xf32>, vector<64x128xf32> -> vector<64x128xf32>
    %174 = vector.broadcast %172 : vector<1x128xf32> to vector<64x128xf32>
    %175 = arith.addf %173, %174 : vector<64x128xf32>
    %cst_43 = arith.constant 0.000000e+00 : f32
    %176 = vector.broadcast %cst_43 : f32 to vector<8x32xf32>
    %cst_44 = arith.constant 0.000000e+00 : f32
    %177 = vector.broadcast %cst_44 : f32 to vector<8x32xf32>
    %178 = vector.extract_strided_slice %175 {offsets = [0, 0], sizes = [8, 128], strides = [1, 1]} : vector<64x128xf32> to vector<8x128xf32>
    %cst_45 = arith.constant dense<0.000000e+00> : vector<8x128xf32>
    %179 = tpu.matmul %176, %171, %cst_45 {dimension_numbers = #tpu.dot_dimension_numbers<[1], [0], [0], [1], [0, 0, 1, 1], [], []>} : vector<8x32xf32>, vector<32x128xf32>, vector<8x128xf32> -> vector<8x128xf32>
    %180 = arith.addf %178, %179 : vector<8x128xf32>
    %181 = vector.extract_strided_slice %180 {offsets = [0, 0], sizes = [8, 96], strides = [1, 1]} : vector<8x128xf32> to vector<8x96xf32>
    %182 = arith.negf %181 : vector<8x96xf32>
    %183 = math.exp %182 : vector<8x96xf32>
    %cst_46 = arith.constant 1.000000e+00 : f32
    %184 = vector.broadcast %cst_46 : f32 to vector<8x96xf32>
    %185 = arith.addf %184, %183 : vector<8x96xf32>
    %186 = arith.divf %184, %185 : vector<8x96xf32>
    %187 = vector.extract_strided_slice %180 {offsets = [0, 96], sizes = [8, 32], strides = [1, 1]} : vector<8x128xf32> to vector<8x32xf32>
    %188 = math.tanh %187 : vector<8x32xf32>
    %189 = vector.extract_strided_slice %186 {offsets = [0, 0], sizes = [8, 32], strides = [1, 1]} : vector<8x96xf32> to vector<8x32xf32>
    %190 = vector.extract_strided_slice %186 {offsets = [0, 32], sizes = [8, 32], strides = [1, 1]} : vector<8x96xf32> to vector<8x32xf32>
    %191 = vector.extract_strided_slice %186 {offsets = [0, 64], sizes = [8, 32], strides = [1, 1]} : vector<8x96xf32> to vector<8x32xf32>
    %192 = arith.mulf %190, %177 : vector<8x32xf32>
    %193 = arith.mulf %189, %188 : vector<8x32xf32>
    %194 = arith.addf %192, %193 : vector<8x32xf32>
    %195 = math.tanh %194 : vector<8x32xf32>
    %196 = arith.mulf %191, %195 : vector<8x32xf32>
    %197 = vector.extract_strided_slice %175 {offsets = [8, 0], sizes = [8, 128], strides = [1, 1]} : vector<64x128xf32> to vector<8x128xf32>
    %cst_47 = arith.constant dense<0.000000e+00> : vector<8x128xf32>
    %198 = tpu.matmul %196, %171, %cst_47 {dimension_numbers = #tpu.dot_dimension_numbers<[1], [0], [0], [1], [0, 0, 1, 1], [], []>} : vector<8x32xf32>, vector<32x128xf32>, vector<8x128xf32> -> vector<8x128xf32>
    %199 = arith.addf %197, %198 : vector<8x128xf32>
    %200 = vector.extract_strided_slice %199 {offsets = [0, 0], sizes = [8, 96], strides = [1, 1]} : vector<8x128xf32> to vector<8x96xf32>
    %201 = arith.negf %200 : vector<8x96xf32>
    %202 = math.exp %201 : vector<8x96xf32>
    %cst_48 = arith.constant 1.000000e+00 : f32
    %203 = vector.broadcast %cst_48 : f32 to vector<8x96xf32>
    %204 = arith.addf %203, %202 : vector<8x96xf32>
    %205 = arith.divf %203, %204 : vector<8x96xf32>
    %206 = vector.extract_strided_slice %199 {offsets = [0, 96], sizes = [8, 32], strides = [1, 1]} : vector<8x128xf32> to vector<8x32xf32>
    %207 = math.tanh %206 : vector<8x32xf32>
    %208 = vector.extract_strided_slice %205 {offsets = [0, 0], sizes = [8, 32], strides = [1, 1]} : vector<8x96xf32> to vector<8x32xf32>
    %209 = vector.extract_strided_slice %205 {offsets = [0, 32], sizes = [8, 32], strides = [1, 1]} : vector<8x96xf32> to vector<8x32xf32>
    %210 = vector.extract_strided_slice %205 {offsets = [0, 64], sizes = [8, 32], strides = [1, 1]} : vector<8x96xf32> to vector<8x32xf32>
    %211 = arith.mulf %209, %194 : vector<8x32xf32>
    %212 = arith.mulf %208, %207 : vector<8x32xf32>
    %213 = arith.addf %211, %212 : vector<8x32xf32>
    %214 = math.tanh %213 : vector<8x32xf32>
    %215 = arith.mulf %210, %214 : vector<8x32xf32>
    %216 = vector.extract_strided_slice %175 {offsets = [16, 0], sizes = [8, 128], strides = [1, 1]} : vector<64x128xf32> to vector<8x128xf32>
    %cst_49 = arith.constant dense<0.000000e+00> : vector<8x128xf32>
    %217 = tpu.matmul %215, %171, %cst_49 {dimension_numbers = #tpu.dot_dimension_numbers<[1], [0], [0], [1], [0, 0, 1, 1], [], []>} : vector<8x32xf32>, vector<32x128xf32>, vector<8x128xf32> -> vector<8x128xf32>
    %218 = arith.addf %216, %217 : vector<8x128xf32>
    %219 = vector.extract_strided_slice %218 {offsets = [0, 0], sizes = [8, 96], strides = [1, 1]} : vector<8x128xf32> to vector<8x96xf32>
    %220 = arith.negf %219 : vector<8x96xf32>
    %221 = math.exp %220 : vector<8x96xf32>
    %cst_50 = arith.constant 1.000000e+00 : f32
    %222 = vector.broadcast %cst_50 : f32 to vector<8x96xf32>
    %223 = arith.addf %222, %221 : vector<8x96xf32>
    %224 = arith.divf %222, %223 : vector<8x96xf32>
    %225 = vector.extract_strided_slice %218 {offsets = [0, 96], sizes = [8, 32], strides = [1, 1]} : vector<8x128xf32> to vector<8x32xf32>
    %226 = math.tanh %225 : vector<8x32xf32>
    %227 = vector.extract_strided_slice %224 {offsets = [0, 0], sizes = [8, 32], strides = [1, 1]} : vector<8x96xf32> to vector<8x32xf32>
    %228 = vector.extract_strided_slice %224 {offsets = [0, 32], sizes = [8, 32], strides = [1, 1]} : vector<8x96xf32> to vector<8x32xf32>
    %229 = vector.extract_strided_slice %224 {offsets = [0, 64], sizes = [8, 32], strides = [1, 1]} : vector<8x96xf32> to vector<8x32xf32>
    %230 = arith.mulf %228, %213 : vector<8x32xf32>
    %231 = arith.mulf %227, %226 : vector<8x32xf32>
    %232 = arith.addf %230, %231 : vector<8x32xf32>
    %233 = math.tanh %232 : vector<8x32xf32>
    %234 = arith.mulf %229, %233 : vector<8x32xf32>
    %235 = vector.extract_strided_slice %175 {offsets = [24, 0], sizes = [8, 128], strides = [1, 1]} : vector<64x128xf32> to vector<8x128xf32>
    %cst_51 = arith.constant dense<0.000000e+00> : vector<8x128xf32>
    %236 = tpu.matmul %234, %171, %cst_51 {dimension_numbers = #tpu.dot_dimension_numbers<[1], [0], [0], [1], [0, 0, 1, 1], [], []>} : vector<8x32xf32>, vector<32x128xf32>, vector<8x128xf32> -> vector<8x128xf32>
    %237 = arith.addf %235, %236 : vector<8x128xf32>
    %238 = vector.extract_strided_slice %237 {offsets = [0, 0], sizes = [8, 96], strides = [1, 1]} : vector<8x128xf32> to vector<8x96xf32>
    %239 = arith.negf %238 : vector<8x96xf32>
    %240 = math.exp %239 : vector<8x96xf32>
    %cst_52 = arith.constant 1.000000e+00 : f32
    %241 = vector.broadcast %cst_52 : f32 to vector<8x96xf32>
    %242 = arith.addf %241, %240 : vector<8x96xf32>
    %243 = arith.divf %241, %242 : vector<8x96xf32>
    %244 = vector.extract_strided_slice %237 {offsets = [0, 96], sizes = [8, 32], strides = [1, 1]} : vector<8x128xf32> to vector<8x32xf32>
    %245 = math.tanh %244 : vector<8x32xf32>
    %246 = vector.extract_strided_slice %243 {offsets = [0, 0], sizes = [8, 32], strides = [1, 1]} : vector<8x96xf32> to vector<8x32xf32>
    %247 = vector.extract_strided_slice %243 {offsets = [0, 32], sizes = [8, 32], strides = [1, 1]} : vector<8x96xf32> to vector<8x32xf32>
    %248 = vector.extract_strided_slice %243 {offsets = [0, 64], sizes = [8, 32], strides = [1, 1]} : vector<8x96xf32> to vector<8x32xf32>
    %249 = arith.mulf %247, %232 : vector<8x32xf32>
    %250 = arith.mulf %246, %245 : vector<8x32xf32>
    %251 = arith.addf %249, %250 : vector<8x32xf32>
    %252 = math.tanh %251 : vector<8x32xf32>
    %253 = arith.mulf %248, %252 : vector<8x32xf32>
    %254 = vector.extract_strided_slice %175 {offsets = [32, 0], sizes = [8, 128], strides = [1, 1]} : vector<64x128xf32> to vector<8x128xf32>
    %cst_53 = arith.constant dense<0.000000e+00> : vector<8x128xf32>
    %255 = tpu.matmul %253, %171, %cst_53 {dimension_numbers = #tpu.dot_dimension_numbers<[1], [0], [0], [1], [0, 0, 1, 1], [], []>} : vector<8x32xf32>, vector<32x128xf32>, vector<8x128xf32> -> vector<8x128xf32>
    %256 = arith.addf %254, %255 : vector<8x128xf32>
    %257 = vector.extract_strided_slice %256 {offsets = [0, 0], sizes = [8, 96], strides = [1, 1]} : vector<8x128xf32> to vector<8x96xf32>
    %258 = arith.negf %257 : vector<8x96xf32>
    %259 = math.exp %258 : vector<8x96xf32>
    %cst_54 = arith.constant 1.000000e+00 : f32
    %260 = vector.broadcast %cst_54 : f32 to vector<8x96xf32>
    %261 = arith.addf %260, %259 : vector<8x96xf32>
    %262 = arith.divf %260, %261 : vector<8x96xf32>
    %263 = vector.extract_strided_slice %256 {offsets = [0, 96], sizes = [8, 32], strides = [1, 1]} : vector<8x128xf32> to vector<8x32xf32>
    %264 = math.tanh %263 : vector<8x32xf32>
    %265 = vector.extract_strided_slice %262 {offsets = [0, 0], sizes = [8, 32], strides = [1, 1]} : vector<8x96xf32> to vector<8x32xf32>
    %266 = vector.extract_strided_slice %262 {offsets = [0, 32], sizes = [8, 32], strides = [1, 1]} : vector<8x96xf32> to vector<8x32xf32>
    %267 = vector.extract_strided_slice %262 {offsets = [0, 64], sizes = [8, 32], strides = [1, 1]} : vector<8x96xf32> to vector<8x32xf32>
    %268 = arith.mulf %266, %251 : vector<8x32xf32>
    %269 = arith.mulf %265, %264 : vector<8x32xf32>
    %270 = arith.addf %268, %269 : vector<8x32xf32>
    %271 = math.tanh %270 : vector<8x32xf32>
    %272 = arith.mulf %267, %271 : vector<8x32xf32>
    %273 = vector.extract_strided_slice %175 {offsets = [40, 0], sizes = [8, 128], strides = [1, 1]} : vector<64x128xf32> to vector<8x128xf32>
    %cst_55 = arith.constant dense<0.000000e+00> : vector<8x128xf32>
    %274 = tpu.matmul %272, %171, %cst_55 {dimension_numbers = #tpu.dot_dimension_numbers<[1], [0], [0], [1], [0, 0, 1, 1], [], []>} : vector<8x32xf32>, vector<32x128xf32>, vector<8x128xf32> -> vector<8x128xf32>
    %275 = arith.addf %273, %274 : vector<8x128xf32>
    %276 = vector.extract_strided_slice %275 {offsets = [0, 0], sizes = [8, 96], strides = [1, 1]} : vector<8x128xf32> to vector<8x96xf32>
    %277 = arith.negf %276 : vector<8x96xf32>
    %278 = math.exp %277 : vector<8x96xf32>
    %cst_56 = arith.constant 1.000000e+00 : f32
    %279 = vector.broadcast %cst_56 : f32 to vector<8x96xf32>
    %280 = arith.addf %279, %278 : vector<8x96xf32>
    %281 = arith.divf %279, %280 : vector<8x96xf32>
    %282 = vector.extract_strided_slice %275 {offsets = [0, 96], sizes = [8, 32], strides = [1, 1]} : vector<8x128xf32> to vector<8x32xf32>
    %283 = math.tanh %282 : vector<8x32xf32>
    %284 = vector.extract_strided_slice %281 {offsets = [0, 0], sizes = [8, 32], strides = [1, 1]} : vector<8x96xf32> to vector<8x32xf32>
    %285 = vector.extract_strided_slice %281 {offsets = [0, 32], sizes = [8, 32], strides = [1, 1]} : vector<8x96xf32> to vector<8x32xf32>
    %286 = vector.extract_strided_slice %281 {offsets = [0, 64], sizes = [8, 32], strides = [1, 1]} : vector<8x96xf32> to vector<8x32xf32>
    %287 = arith.mulf %285, %270 : vector<8x32xf32>
    %288 = arith.mulf %284, %283 : vector<8x32xf32>
    %289 = arith.addf %287, %288 : vector<8x32xf32>
    %290 = math.tanh %289 : vector<8x32xf32>
    %291 = arith.mulf %286, %290 : vector<8x32xf32>
    %292 = vector.extract_strided_slice %175 {offsets = [48, 0], sizes = [8, 128], strides = [1, 1]} : vector<64x128xf32> to vector<8x128xf32>
    %cst_57 = arith.constant dense<0.000000e+00> : vector<8x128xf32>
    %293 = tpu.matmul %291, %171, %cst_57 {dimension_numbers = #tpu.dot_dimension_numbers<[1], [0], [0], [1], [0, 0, 1, 1], [], []>} : vector<8x32xf32>, vector<32x128xf32>, vector<8x128xf32> -> vector<8x128xf32>
    %294 = arith.addf %292, %293 : vector<8x128xf32>
    %295 = vector.extract_strided_slice %294 {offsets = [0, 0], sizes = [8, 96], strides = [1, 1]} : vector<8x128xf32> to vector<8x96xf32>
    %296 = arith.negf %295 : vector<8x96xf32>
    %297 = math.exp %296 : vector<8x96xf32>
    %cst_58 = arith.constant 1.000000e+00 : f32
    %298 = vector.broadcast %cst_58 : f32 to vector<8x96xf32>
    %299 = arith.addf %298, %297 : vector<8x96xf32>
    %300 = arith.divf %298, %299 : vector<8x96xf32>
    %301 = vector.extract_strided_slice %294 {offsets = [0, 96], sizes = [8, 32], strides = [1, 1]} : vector<8x128xf32> to vector<8x32xf32>
    %302 = math.tanh %301 : vector<8x32xf32>
    %303 = vector.extract_strided_slice %300 {offsets = [0, 0], sizes = [8, 32], strides = [1, 1]} : vector<8x96xf32> to vector<8x32xf32>
    %304 = vector.extract_strided_slice %300 {offsets = [0, 32], sizes = [8, 32], strides = [1, 1]} : vector<8x96xf32> to vector<8x32xf32>
    %305 = vector.extract_strided_slice %300 {offsets = [0, 64], sizes = [8, 32], strides = [1, 1]} : vector<8x96xf32> to vector<8x32xf32>
    %306 = arith.mulf %304, %289 : vector<8x32xf32>
    %307 = arith.mulf %303, %302 : vector<8x32xf32>
    %308 = arith.addf %306, %307 : vector<8x32xf32>
    %309 = math.tanh %308 : vector<8x32xf32>
    %310 = arith.mulf %305, %309 : vector<8x32xf32>
    %311 = vector.extract_strided_slice %175 {offsets = [56, 0], sizes = [8, 128], strides = [1, 1]} : vector<64x128xf32> to vector<8x128xf32>
    %cst_59 = arith.constant dense<0.000000e+00> : vector<8x128xf32>
    %312 = tpu.matmul %310, %171, %cst_59 {dimension_numbers = #tpu.dot_dimension_numbers<[1], [0], [0], [1], [0, 0, 1, 1], [], []>} : vector<8x32xf32>, vector<32x128xf32>, vector<8x128xf32> -> vector<8x128xf32>
    %313 = arith.addf %311, %312 : vector<8x128xf32>
    %314 = vector.extract_strided_slice %313 {offsets = [0, 0], sizes = [8, 96], strides = [1, 1]} : vector<8x128xf32> to vector<8x96xf32>
    %315 = arith.negf %314 : vector<8x96xf32>
    %316 = math.exp %315 : vector<8x96xf32>
    %cst_60 = arith.constant 1.000000e+00 : f32
    %317 = vector.broadcast %cst_60 : f32 to vector<8x96xf32>
    %318 = arith.addf %317, %316 : vector<8x96xf32>
    %319 = arith.divf %317, %318 : vector<8x96xf32>
    %320 = vector.extract_strided_slice %313 {offsets = [0, 96], sizes = [8, 32], strides = [1, 1]} : vector<8x128xf32> to vector<8x32xf32>
    %321 = math.tanh %320 : vector<8x32xf32>
    %322 = vector.extract_strided_slice %319 {offsets = [0, 0], sizes = [8, 32], strides = [1, 1]} : vector<8x96xf32> to vector<8x32xf32>
    %323 = vector.extract_strided_slice %319 {offsets = [0, 32], sizes = [8, 32], strides = [1, 1]} : vector<8x96xf32> to vector<8x32xf32>
    %324 = vector.extract_strided_slice %319 {offsets = [0, 64], sizes = [8, 32], strides = [1, 1]} : vector<8x96xf32> to vector<8x32xf32>
    %325 = arith.mulf %323, %308 : vector<8x32xf32>
    %326 = arith.mulf %322, %321 : vector<8x32xf32>
    %327 = arith.addf %325, %326 : vector<8x32xf32>
    %328 = math.tanh %327 : vector<8x32xf32>
    %329 = arith.mulf %324, %328 : vector<8x32xf32>
    %c0_61 = arith.constant 0 : index
    %c0_62 = arith.constant 0 : index
    %330 = vector.load %arg7[%c0_61, %c0_62] : memref<32x8xf32, #tpu.memory_space<vmem>>, vector<32x8xf32>
    %c0_63 = arith.constant 0 : index
    %c0_64 = arith.constant 0 : index
    %331 = vector.load %arg8[%c0_63, %c0_64] : memref<1x8xf32, #tpu.memory_space<vmem>>, vector<1x8xf32>
    %cst_65 = arith.constant dense<0.000000e+00> : vector<8x8xf32>
    %332 = tpu.matmul %329, %330, %cst_65 {dimension_numbers = #tpu.dot_dimension_numbers<[1], [0], [0], [1], [0, 0, 1, 1], [], []>} : vector<8x32xf32>, vector<32x8xf32>, vector<8x8xf32> -> vector<8x8xf32>
    %333 = vector.broadcast %331 : vector<1x8xf32> to vector<8x8xf32>
    %334 = arith.addf %332, %333 : vector<8x8xf32>
    %335 = math.tanh %334 : vector<8x8xf32>
    %c0_66 = arith.constant 0 : index
    %c0_67 = arith.constant 0 : index
    %336 = vector.load %arg9[%c0_66, %c0_67] : memref<8x8xf32, #tpu.memory_space<vmem>>, vector<8x8xf32>
    %c0_68 = arith.constant 0 : index
    %c0_69 = arith.constant 0 : index
    %337 = vector.load %arg10[%c0_68, %c0_69] : memref<1x8xf32, #tpu.memory_space<vmem>>, vector<1x8xf32>
    %cst_70 = arith.constant dense<0.000000e+00> : vector<8x8xf32>
    %338 = tpu.matmul %335, %336, %cst_70 {dimension_numbers = #tpu.dot_dimension_numbers<[1], [0], [0], [1], [0, 0, 1, 1], [], []>} : vector<8x8xf32>, vector<8x8xf32>, vector<8x8xf32> -> vector<8x8xf32>
    %339 = vector.broadcast %337 : vector<1x8xf32> to vector<8x8xf32>
    %340 = arith.addf %338, %339 : vector<8x8xf32>
    %341 = math.tanh %340 : vector<8x8xf32>
    %c0_71 = arith.constant 0 : index
    %c0_72 = arith.constant 0 : index
    %342 = vector.load %arg11[%c0_71, %c0_72] : memref<8x8xf32, #tpu.memory_space<vmem>>, vector<8x8xf32>
    %c0_73 = arith.constant 0 : index
    %c0_74 = arith.constant 0 : index
    %343 = vector.load %arg12[%c0_73, %c0_74] : memref<1x8xf32, #tpu.memory_space<vmem>>, vector<1x8xf32>
    %cst_75 = arith.constant dense<0.000000e+00> : vector<8x8xf32>
    %344 = tpu.matmul %341, %342, %cst_75 {dimension_numbers = #tpu.dot_dimension_numbers<[1], [0], [0], [1], [0, 0, 1, 1], [], []>} : vector<8x8xf32>, vector<8x8xf32>, vector<8x8xf32> -> vector<8x8xf32>
    %345 = vector.broadcast %343 : vector<1x8xf32> to vector<8x8xf32>
    %346 = arith.addf %344, %345 : vector<8x8xf32>
    %347 = math.tanh %346 : vector<8x8xf32>
    %c0_76 = arith.constant 0 : index
    %c0_77 = arith.constant 0 : index
    %348 = vector.load %arg13[%c0_76, %c0_77] : memref<8x8xf32, #tpu.memory_space<vmem>>, vector<8x8xf32>
    tpu.vector_store %arg13[%c0_76, %c0_77], %347 {strides = array<i32>} : memref<8x8xf32, #tpu.memory_space<vmem>>, vector<8x8xf32>,
    return
  }
}

</mosaic_0001>

<llo_original>
// kernel: deep_mtl_tsmom_forward.1
$region0: #{deep_mtl_tsmom_forward.1}
  #allocation0 [shape = 'u32[]', space=smem, size = 0x4, offset = 0x4, fixed_abs, tag = 'smem constant byte address 0x4 - core index']
  #allocation1 [shape = 'u32[144,128]{1,0:T(1,128)}', space=vmem, size = 0x12000, scoped, tag = 'internal scratch']
  #allocation2 [shape = 'f32[64,32]{1,0:T(8,128)}', space=vmem, size = 0x8000, scoped, tag = 'scratch operand']
  #allocation3 [shape = 'f32[64,32]{1,0:T(8,128)}', space=vmem, size = 0x8000, scoped, tag = 'scratch operand']
  %s0 = inlined_call_operand.vmem [shape: f32[64,4], index: 0, kind: input, shape index: {}]
  %s1 = inlined_call_operand.vmem [shape: f32[4,128], index: 1, kind: input, shape index: {}]
  %s2 = inlined_call_operand.vmem [shape: f32[32,128], index: 2, kind: input, shape index: {}]
  %s3 = inlined_call_operand.vmem [shape: f32[1,128], index: 3, kind: input, shape index: {}]
  %s4 = inlined_call_operand.vmem [shape: f32[32,128], index: 4, kind: input, shape index: {}]
  %s5 = inlined_call_operand.vmem [shape: f32[32,128], index: 5, kind: input, shape index: {}]
  %s6 = inlined_call_operand.vmem [shape: f32[1,128], index: 6, kind: input, shape index: {}]
  %s7 = inlined_call_operand.vmem [shape: f32[32,8], index: 7, kind: input, shape index: {}]
  %s8 = inlined_call_operand.vmem [shape: f32[1,8], index: 8, kind: input, shape index: {}]
  %s9 = inlined_call_operand.vmem [shape: f32[8,8], index: 9, kind: input, shape index: {}]
  %s10 = inlined_call_operand.vmem [shape: f32[1,8], index: 10, kind: input, shape index: {}]
  %s11 = inlined_call_operand.vmem [shape: f32[8,8], index: 11, kind: input, shape index: {}]
  %s12 = inlined_call_operand.vmem [shape: f32[1,8], index: 12, kind: input, shape index: {}]
  %s13 = inlined_call_operand.vmem [shape: f32[8,8], index: 13, kind: output, shape index: {}]
  %s14 = sld [smem:[#allocation0]]
  $region62: #{deep_mtl_tsmom_forward.1} parent=0
    _
  %s16 = ssub.s32 1, %s14
  %s17 = scalar_select 0, %s16, %s14
  // Predicated region
  $region2: #{deep_mtl_tsmom_forward.1} parent=0 // pred_check
    _
  $region3: #{deep_mtl_tsmom_forward.1} parent=0 // pred_check_branch
    %19 = sbr.rel (0) target = $region5
  $region4: #{deep_mtl_tsmom_forward.1} parent=0 // pred_region
    _
  $region5: #{deep_mtl_tsmom_forward.1} parent=0 // pred_fallthru
    _
  // Predicated region
  $region6: #{deep_mtl_tsmom_forward.1} parent=0 // pred_check
    _
  $region7: #{deep_mtl_tsmom_forward.1} parent=0 // pred_check_branch
    %21 = sbr.rel (0) target = $region9
  $region8: #{deep_mtl_tsmom_forward.1} parent=0 // pred_region
    _
  $region9: #{deep_mtl_tsmom_forward.1} parent=0 // pred_fallthru
    _
  // Predicated region
  $region10: #{deep_mtl_tsmom_forward.1} parent=0 // pred_check
    _
  $region11: #{deep_mtl_tsmom_forward.1} parent=0 // pred_check_branch
    %23 = sbr.rel (0) target = $region13
  $region12: #{deep_mtl_tsmom_forward.1} parent=0 // pred_region
    _
  $region13: #{deep_mtl_tsmom_forward.1} parent=0 // pred_fallthru
    _
  // Predicated region
  $region14: #{deep_mtl_tsmom_forward.1} parent=0 // pred_check
    _
  $region15: #{deep_mtl_tsmom_forward.1} parent=0 // pred_check_branch
    %25 = sbr.rel (0) target = $region17
  $region16: #{deep_mtl_tsmom_forward.1} parent=0 // pred_region
    _
  $region17: #{deep_mtl_tsmom_forward.1} parent=0 // pred_fallthru
    _
  // Predicated region
  $region18: #{deep_mtl_tsmom_forward.1} parent=0 // pred_check
    _
  $region19: #{deep_mtl_tsmom_forward.1} parent=0 // pred_check_branch
    %27 = sbr.rel (0) target = $region21
  $region20: #{deep_mtl_tsmom_forward.1} parent=0 // pred_region
    _
  $region21: #{deep_mtl_tsmom_forward.1} parent=0 // pred_fallthru
    _
  // Predicated region
  $region22: #{deep_mtl_tsmom_forward.1} parent=0 // pred_check
    _
  $region23: #{deep_mtl_tsmom_forward.1} parent=0 // pred_check_branch
    %29 = sbr.rel (0) target = $region25
  $region24: #{deep_mtl_tsmom_forward.1} parent=0 // pred_region
    _
  $region25: #{deep_mtl_tsmom_forward.1} parent=0 // pred_fallthru
    _
  // Predicated region
  $region26: #{deep_mtl_tsmom_forward.1} parent=0 // pred_check
    _
  $region27: #{deep_mtl_tsmom_forward.1} parent=0 // pred_check_branch
    %31 = sbr.rel (0) target = $region29
  $region28: #{deep_mtl_tsmom_forward.1} parent=0 // pred_region
    _
  $region29: #{deep_mtl_tsmom_forward.1} parent=0 // pred_fallthru
    _
  // Predicated region
  $region30: #{deep_mtl_tsmom_forward.1} parent=0 // pred_check
    _
  $region31: #{deep_mtl_tsmom_forward.1} parent=0 // pred_check_branch
    %33 = sbr.rel (0) target = $region33
  $region32: #{deep_mtl_tsmom_forward.1} parent=0 // pred_region
    _
  $region33: #{deep_mtl_tsmom_forward.1} parent=0 // pred_fallthru
    _
  // Predicated region
  $region34: #{deep_mtl_tsmom_forward.1} parent=0 // pred_check
    _
  $region35: #{deep_mtl_tsmom_forward.1} parent=0 // pred_check_branch
    %35 = sbr.rel (0) target = $region37
  $region36: #{deep_mtl_tsmom_forward.1} parent=0 // pred_region
    _
  $region37: #{deep_mtl_tsmom_forward.1} parent=0 // pred_fallthru
    _
  // Predicated region
  $region38: #{deep_mtl_tsmom_forward.1} parent=0 // pred_check
    _
  $region39: #{deep_mtl_tsmom_forward.1} parent=0 // pred_check_branch
    %37 = sbr.rel (0) target = $region41
  $region40: #{deep_mtl_tsmom_forward.1} parent=0 // pred_region
    _
  $region41: #{deep_mtl_tsmom_forward.1} parent=0 // pred_fallthru
    _
  // Predicated region
  $region42: #{deep_mtl_tsmom_forward.1} parent=0 // pred_check
    _
  $region43: #{deep_mtl_tsmom_forward.1} parent=0 // pred_check_branch
    %39 = sbr.rel (0) target = $region45
  $region44: #{deep_mtl_tsmom_forward.1} parent=0 // pred_region
    _
  $region45: #{deep_mtl_tsmom_forward.1} parent=0 // pred_fallthru
    _
  // Predicated region
  $region46: #{deep_mtl_tsmom_forward.1} parent=0 // pred_check
    _
  $region47: #{deep_mtl_tsmom_forward.1} parent=0 // pred_check_branch
    %41 = sbr.rel (0) target = $region49
  $region48: #{deep_mtl_tsmom_forward.1} parent=0 // pred_region
    _
  $region49: #{deep_mtl_tsmom_forward.1} parent=0 // pred_fallthru
    _
  // Predicated region
  $region50: #{deep_mtl_tsmom_forward.1} parent=0 // pred_check
    _
  $region51: #{deep_mtl_tsmom_forward.1} parent=0 // pred_check_branch
    %43 = sbr.rel (0) target = $region53
  $region52: #{deep_mtl_tsmom_forward.1} parent=0 // pred_region
    _
  $region53: #{deep_mtl_tsmom_forward.1} parent=0 // pred_fallthru
    _
  %v44 = vld [vmem:[%s0] sm:$0xff]
  %v45 = vld [vmem:[%s0 + $0x8] sm:$0xff]
  %v46 = vld [vmem:[%s0 + $0x10] sm:$0xff]
  %v47 = vld [vmem:[%s0 + $0x18] sm:$0xff]
  %v48 = vld [vmem:[%s0 + $0x20] sm:$0xff]
  %v49 = vld [vmem:[%s0 + $0x28] sm:$0xff]
  %v50 = vld [vmem:[%s0 + $0x30] sm:$0xff]
  %v51 = vld [vmem:[%s0 + $0x38] sm:$0xff]
  %v52 = vld [vmem:[%s1] sm:$0xf]
  %v53 = vld [vmem:[%s2] sm:$0xff]
  %v54 = vld [vmem:[%s2 + $0x8] sm:$0xff]
  %v55 = vld [vmem:[%s2 + $0x10] sm:$0xff]
  %v56 = vld [vmem:[%s2 + $0x18] sm:$0xff]
  %v57 = vld [vmem:[%s3] sm:$0x1]
  %v59 = vlaneseq
  %v60 = vshrl.u32 %v59, 7
  %v61 = vsub.s32 0, %v60
  %v62 = vrot.slane %v57, %v61
  %vm64 = vcmask 31744
  %v66 = vsel %vm64, %v44, 0
  %v69 = vsel %vm64, %v45, 0
  %v72 = vsel %vm64, %v46, 0
  %v75 = vsel %vm64, %v47, 0
  %v78 = vsel %vm64, %v48, 0
  %v81 = vsel %vm64, %v49, 0
  %v84 = vsel %vm64, %v50, 0
  %v87 = vsel %vm64, %v51, 0
  %vm89 = vcmask 1043456
  %v91 = vsel %vm89, %v52, 0
  %93 = vmatprep.subr.mxu0 0.0
  %94 = vmatpush1.msra.mxu0 %v91
  %95 = vmatprep.subr.mxu0 0.0
  %96 = vmatpush1.msra.mxu0 0.0
  %97 = vmatprep.subr.mxu0 0.0
  %98 = vmatpush1.msra.mxu0 0.0
  %99 = vmatprep.subr.mxu0 0.0
  %100 = vmatpush1.msra.mxu0 0.0
  %101 = vmatprep.subr.mxu0 0.0
  %102 = vmatpush1.msra.mxu0 0.0
  %103 = vmatprep.subr.mxu0 0.0
  %104 = vmatpush1.msra.mxu0 0.0
  %105 = vmatprep.subr.mxu0 0.0
  %106 = vmatpush1.msra.mxu0 0.0
  %107 = vmatprep.subr.mxu0 0.0
  %108 = vmatpush1.msra.mxu0 0.0
  %109 = vmatprep.subr.mxu0 0.0
  %110 = vmatpush1.msra.mxu0 0.0
  %111 = vmatprep.subr.mxu0 0.0
  %112 = vmatpush1.msra.mxu0 0.0
  %113 = vmatprep.subr.mxu0 0.0
  %114 = vmatpush1.msra.mxu0 0.0
  %115 = vmatprep.subr.mxu0 0.0
  %116 = vmatpush1.msra.mxu0 0.0
  %117 = vmatprep.subr.mxu0 0.0
  %118 = vmatpush1.msra.mxu0 0.0
  %119 = vmatprep.subr.mxu0 0.0
  %120 = vmatpush1.msra.mxu0 0.0
  %121 = vmatprep.subr.mxu0 0.0
  %122 = vmatpush1.msra.mxu0 0.0
  %123 = vmatprep.subr.mxu0 0.0
  %124 = vmatpush1.msra.mxu0 0.0
  %125 = vmatprep.subr.mxu0 0.0
  %126 = vmatpush1.msra.mxu0 0.0
  %127 = vmatprep.subr.mxu0 0.0
  %128 = vmatpush1.msra.mxu0 0.0
  %129 = vmatprep.subr.mxu0 0.0
  %130 = vmatpush1.msra.mxu0 0.0
  %131 = vmatprep.subr.mxu0 0.0
  %132 = vmatpush1.msra.mxu0 0.0
  %133 = vmatprep.subr.mxu0 0.0
  %134 = vmatpush1.msra.mxu0 0.0
  %135 = vmatprep.subr.mxu0 0.0
  %136 = vmatpush1.msra.mxu0 0.0
  %137 = vmatprep.subr.mxu0 0.0
  %138 = vmatpush1.msra.mxu0 0.0
  %139 = vmatprep.subr.mxu0 0.0
  %140 = vmatpush1.msra.mxu0 0.0
  %141 = vmatprep.subr.mxu0 0.0
  %142 = vmatpush1.msra.mxu0 0.0
  %143 = vmatprep.subr.mxu0 0.0
  %144 = vmatpush1.msra.mxu0 0.0
  %145 = vmatprep.subr.mxu0 0.0
  %146 = vmatpush1.msra.mxu0 0.0
  %147 = vmatprep.subr.mxu0 0.0
  %148 = vmatpush1.msra.mxu0 0.0
  %149 = vmatprep.subr.mxu0 0.0
  %150 = vmatpush1.msra.mxu0 0.0
  %151 = vmatprep.subr.mxu0 0.0
  %152 = vmatpush1.msra.mxu0 0.0
  %153 = vmatprep.subr.mxu0 0.0
  %154 = vmatpush1.msra.mxu0 0.0
  %155 = vmatprep.subr.mxu0 0.0
  %156 = vmatpush1.msra.mxu0 0.0
  %157 = vmatprep.mubr.f32.mxu0 0.0
  %158 = vmatmul.mubr.f32.gmra.mrb[0].mxu0 %v66
  %v159 = vpop.f32.mrb[0].mxu0
  %v160 = vadd.f32 %v62, %v159
  %v161 = vpop.f32.mrb[0].mxu0
  %162 = vmatprep.mubr.f32.mxu0 0.0
  %163 = vmatmul.mubr.f32.gmra.mrb[0].mxu0 %v69
  %v164 = vpop.f32.mrb[0].mxu0
  %v165 = vadd.f32 %v62, %v164
  %v166 = vpop.f32.mrb[0].mxu0
  %167 = vmatprep.mubr.f32.mxu0 0.0
  %168 = vmatmul.mubr.f32.gmra.mrb[0].mxu0 %v72
  %v169 = vpop.f32.mrb[0].mxu0
  %v170 = vadd.f32 %v62, %v169
  %v171 = vpop.f32.mrb[0].mxu0
  %172 = vmatprep.mubr.f32.mxu0 0.0
  %173 = vmatmul.mubr.f32.gmra.mrb[0].mxu0 %v75
  %v174 = vpop.f32.mrb[0].mxu0
  %v175 = vadd.f32 %v62, %v174
  %v176 = vpop.f32.mrb[0].mxu0
  %177 = vmatprep.mubr.f32.mxu0 0.0
  %178 = vmatmul.mubr.f32.gmra.mrb[0].mxu0 %v78
  %v179 = vpop.f32.mrb[0].mxu0
  %v180 = vadd.f32 %v62, %v179
  %v181 = vpop.f32.mrb[0].mxu0
  %182 = vmatprep.mubr.f32.mxu0 0.0
  %183 = vmatmul.mubr.f32.gmra.mrb[0].mxu0 %v81
  %v184 = vpop.f32.mrb[0].mxu0
  %v185 = vadd.f32 %v62, %v184
  %v186 = vpop.f32.mrb[0].mxu0
  %187 = vmatprep.mubr.f32.mxu0 0.0
  %188 = vmatmul.mubr.f32.gmra.mrb[0].mxu0 %v84
  %v189 = vpop.f32.mrb[0].mxu0
  %v190 = vadd.f32 %v62, %v189
  %v191 = vpop.f32.mrb[0].mxu0
  %192 = vmatprep.mubr.f32.mxu0 0.0
  %193 = vmatmul.mubr.f32.gmra.mrb[0].mxu0 %v87
  %v194 = vpop.f32.mrb[0].mxu0
  %v195 = vadd.f32 %v62, %v194
  %v196 = vpop.f32.mrb[0].mxu0
  %197 = vdwg.mxu0
  %vm198 = vcmask 261120
  %v200 = vsel %vm198, 0.0, 0
  %202 = vmatprep.subr.mxu0 0.0
  %203 = vmatpush1.msra.mxu0 %v53
  %204 = vmatprep.subr.mxu0 0.0
  %205 = vmatpush1.msra.mxu0 %v54
  %206 = vmatprep.subr.mxu0 0.0
  %207 = vmatpush1.msra.mxu0 %v55
  %208 = vmatprep.subr.mxu0 0.0
  %209 = vmatpush1.msra.mxu0 %v56
  %210 = vmatprep.subr.mxu0 0.0
  %211 = vmatpush1.msra.mxu0 0.0
  %212 = vmatprep.subr.mxu0 0.0
  %213 = vmatpush1.msra.mxu0 0.0
  %214 = vmatprep.subr.mxu0 0.0
  %215 = vmatpush1.msra.mxu0 0.0
  %216 = vmatprep.subr.mxu0 0.0
  %217 = vmatpush1.msra.mxu0 0.0
  %218 = vmatprep.subr.mxu0 0.0
  %219 = vmatpush1.msra.mxu0 0.0
  %220 = vmatprep.subr.mxu0 0.0
  %221 = vmatpush1.msra.mxu0 0.0
  %222 = vmatprep.subr.mxu0 0.0
  %223 = vmatpush1.msra.mxu0 0.0
  %224 = vmatprep.subr.mxu0 0.0
  %225 = vmatpush1.msra.mxu0 0.0
  %226 = vmatprep.subr.mxu0 0.0
  %227 = vmatpush1.msra.mxu0 0.0
  %228 = vmatprep.subr.mxu0 0.0
  %229 = vmatpush1.msra.mxu0 0.0
  %230 = vmatprep.subr.mxu0 0.0
  %231 = vmatpush1.msra.mxu0 0.0
  %232 = vmatprep.subr.mxu0 0.0
  %233 = vmatpush1.msra.mxu0 0.0
  %234 = vmatprep.subr.mxu0 0.0
  %235 = vmatpush1.msra.mxu0 0.0
  %236 = vmatprep.subr.mxu0 0.0
  %237 = vmatpush1.msra.mxu0 0.0
  %238 = vmatprep.subr.mxu0 0.0
  %239 = vmatpush1.msra.mxu0 0.0
  %240 = vmatprep.subr.mxu0 0.0
  %241 = vmatpush1.msra.mxu0 0.0
  %242 = vmatprep.subr.mxu0 0.0
  %243 = vmatpush1.msra.mxu0 0.0
  %244 = vmatprep.subr.mxu0 0.0
  %245 = vmatpush1.msra.mxu0 0.0
  %246 = vmatprep.subr.mxu0 0.0
  %247 = vmatpush1.msra.mxu0 0.0
  %248 = vmatprep.subr.mxu0 0.0
  %249 = vmatpush1.msra.mxu0 0.0
  %250 = vmatprep.subr.mxu0 0.0
  %251 = vmatpush1.msra.mxu0 0.0
  %252 = vmatprep.subr.mxu0 0.0
  %253 = vmatpush1.msra.mxu0 0.0
  %254 = vmatprep.subr.mxu0 0.0
  %255 = vmatpush1.msra.mxu0 0.0
  %256 = vmatprep.subr.mxu0 0.0
  %257 = vmatpush1.msra.mxu0 0.0
  %258 = vmatprep.subr.mxu0 0.0
  %259 = vmatpush1.msra.mxu0 0.0
  %260 = vmatprep.subr.mxu0 0.0
  %261 = vmatpush1.msra.mxu0 0.0
  %262 = vmatprep.subr.mxu0 0.0
  %263 = vmatpush1.msra.mxu0 0.0
  %264 = vmatprep.subr.mxu0 0.0
  %265 = vmatpush1.msra.mxu0 0.0
  %266 = vmatprep.mubr.f32.mxu0 0.0
  %267 = vmatmul.mubr.f32.gmra.mrb[0].mxu0 %v200
  %v268 = vpop.f32.mrb[0].mxu0
  %v269 = vadd.f32 0.0, %v268
  %v270 = vpop.f32.mrb[0].mxu0
  %271 = vdwg.mxu0
  %v272 = vadd.f32 %v160, %v269
  %v273 = vxor.u32 %v272, 2147483648
  %v274 = vmul.f32 %v273, 1.442695
  %v275 = vpow.pop %v274
  %v276 = vadd.f32 %v275, 1.0
  %v277 = vrcp.pop %v276
  %v278 = vmul.f32 1.0, %v277
  %v279 = vtanh.pop %v272
  %v280 = vmul.f32 %v278, 0.0
  %282 = vrot.lane.b32.xlu0 %v279, 32
  %v283 = vpop.permute.xlu0 %282
  %v285 = vmul.f32 %v278, %v283
  %287 = vrot.lane.b32.xlu0 %v285, 32
  %v288 = vpop.permute.xlu0 %287
  %v290 = vadd.f32 %v280, %v288
  %v291 = vtanh.pop %v290
  %293 = vrot.lane.b32.xlu0 %v291, 32
  %v294 = vpop.permute.xlu0 %293
  %v296 = vmul.f32 %v278, %v294
  %298 = vrot.lane.b32.xlu0 %v296, 64
  %v299 = vpop.permute.xlu0 %298
  %301 = vst.msk [vmem:[#allocation2] sm:$0xff] %vm198, %v299
  %v302 = vsel %vm198, %v299, 0
  %304 = vmatprep.subr.mxu0 0.0
  %305 = vmatpush1.msra.mxu0 %v53
  %306 = vmatprep.subr.mxu0 0.0
  %307 = vmatpush1.msra.mxu0 %v54
  %308 = vmatprep.subr.mxu0 0.0
  %309 = vmatpush1.msra.mxu0 %v55
  %310 = vmatprep.subr.mxu0 0.0
  %311 = vmatpush1.msra.mxu0 %v56
  %312 = vmatprep.subr.mxu0 0.0
  %313 = vmatpush1.msra.mxu0 0.0
  %314 = vmatprep.subr.mxu0 0.0
  %315 = vmatpush1.msra.mxu0 0.0
  %316 = vmatprep.subr.mxu0 0.0
  %317 = vmatpush1.msra.mxu0 0.0
  %318 = vmatprep.subr.mxu0 0.0
  %319 = vmatpush1.msra.mxu0 0.0
  %320 = vmatprep.subr.mxu0 0.0
  %321 = vmatpush1.msra.mxu0 0.0
  %322 = vmatprep.subr.mxu0 0.0
  %323 = vmatpush1.msra.mxu0 0.0
  %324 = vmatprep.subr.mxu0 0.0
  %325 = vmatpush1.msra.mxu0 0.0
  %326 = vmatprep.subr.mxu0 0.0
  %327 = vmatpush1.msra.mxu0 0.0
  %328 = vmatprep.subr.mxu0 0.0
  %329 = vmatpush1.msra.mxu0 0.0
  %330 = vmatprep.subr.mxu0 0.0
  %331 = vmatpush1.msra.mxu0 0.0
  %332 = vmatprep.subr.mxu0 0.0
  %333 = vmatpush1.msra.mxu0 0.0
  %334 = vmatprep.subr.mxu0 0.0
  %335 = vmatpush1.msra.mxu0 0.0
  %336 = vmatprep.subr.mxu0 0.0
  %337 = vmatpush1.msra.mxu0 0.0
  %338 = vmatprep.subr.mxu0 0.0
  %339 = vmatpush1.msra.mxu0 0.0
  %340 = vmatprep.subr.mxu0 0.0
  %341 = vmatpush1.msra.mxu0 0.0
  %342 = vmatprep.subr.mxu0 0.0
  %343 = vmatpush1.msra.mxu0 0.0
  %344 = vmatprep.subr.mxu0 0.0
  %345 = vmatpush1.msra.mxu0 0.0
  %346 = vmatprep.subr.mxu0 0.0
  %347 = vmatpush1.msra.mxu0 0.0
  %348 = vmatprep.subr.mxu0 0.0
  %349 = vmatpush1.msra.mxu0 0.0
  %350 = vmatprep.subr.mxu0 0.0
  %351 = vmatpush1.msra.mxu0 0.0
  %352 = vmatprep.subr.mxu0 0.0
  %353 = vmatpush1.msra.mxu0 0.0
  %354 = vmatprep.subr.mxu0 0.0
  %355 = vmatpush1.msra.mxu0 0.0
  %356 = vmatprep.subr.mxu0 0.0
  %357 = vmatpush1.msra.mxu0 0.0
  %358 = vmatprep.subr.mxu0 0.0
  %359 = vmatpush1.msra.mxu0 0.0
  %360 = vmatprep.subr.mxu0 0.0
  %361 = vmatpush1.msra.mxu0 0.0
  %362 = vmatprep.subr.mxu0 0.0
  %363 = vmatpush1.msra.mxu0 0.0
  %364 = vmatprep.subr.mxu0 0.0
  %365 = vmatpush1.msra.mxu0 0.0
  %366 = vmatprep.subr.mxu0 0.0
  %367 = vmatpush1.msra.mxu0 0.0
  %368 = vmatprep.mubr.f32.mxu0 0.0
  %369 = vmatmul.mubr.f32.gmra.mrb[0].mxu0 %v302
  %v370 = vpop.f32.mrb[0].mxu0
  %v371 = vadd.f32 0.0, %v370
  %v372 = vpop.f32.mrb[0].mxu0
  %373 = vdwg.mxu0
  %v374 = vadd.f32 %v165, %v371
  %v375 = vxor.u32 %v374, 2147483648
  %v376 = vmul.f32 %v375, 1.442695
  %v377 = vpow.pop %v376
  %v378 = vadd.f32 %v377, 1.0
  %v379 = vrcp.pop %v378
  %v380 = vmul.f32 1.0, %v379
  %v381 = vtanh.pop %v374
  %v382 = vmul.f32 %v380, %v290
  %384 = vrot.lane.b32.xlu0 %v381, 32
  %v385 = vpop.permute.xlu0 %384
  %v387 = vmul.f32 %v380, %v385
  %389 = vrot.lane.b32.xlu0 %v387, 32
  %v390 = vpop.permute.xlu0 %389
  %v392 = vadd.f32 %v382, %v390
  %v393 = vtanh.pop %v392
  %395 = vrot.lane.b32.xlu0 %v393, 32
  %v396 = vpop.permute.xlu0 %395
  %v398 = vmul.f32 %v380, %v396
  %400 = vrot.lane.b32.xlu0 %v398, 64
  %v401 = vpop.permute.xlu0 %400
  %403 = vst.msk [vmem:[#allocation2 + $0x8] sm:$0xff] %vm198, %v401
  %v404 = vsel %vm198, %v401, 0
  %406 = vmatprep.subr.mxu0 0.0
  %407 = vmatpush1.msra.mxu0 %v53
  %408 = vmatprep.subr.mxu0 0.0
  %409 = vmatpush1.msra.mxu0 %v54
  %410 = vmatprep.subr.mxu0 0.0
  %411 = vmatpush1.msra.mxu0 %v55
  %412 = vmatprep.subr.mxu0 0.0
  %413 = vmatpush1.msra.mxu0 %v56
  %414 = vmatprep.subr.mxu0 0.0
  %415 = vmatpush1.msra.mxu0 0.0
  %416 = vmatprep.subr.mxu0 0.0
  %417 = vmatpush1.msra.mxu0 0.0
  %418 = vmatprep.subr.mxu0 0.0
  %419 = vmatpush1.msra.mxu0 0.0
  %420 = vmatprep.subr.mxu0 0.0
  %421 = vmatpush1.msra.mxu0 0.0
  %422 = vmatprep.subr.mxu0 0.0
  %423 = vmatpush1.msra.mxu0 0.0
  %424 = vmatprep.subr.mxu0 0.0
  %425 = vmatpush1.msra.mxu0 0.0
  %426 = vmatprep.subr.mxu0 0.0
  %427 = vmatpush1.msra.mxu0 0.0
  %428 = vmatprep.subr.mxu0 0.0
  %429 = vmatpush1.msra.mxu0 0.0
  %430 = vmatprep.subr.mxu0 0.0
  %431 = vmatpush1.msra.mxu0 0.0
  %432 = vmatprep.subr.mxu0 0.0
  %433 = vmatpush1.msra.mxu0 0.0
  %434 = vmatprep.subr.mxu0 0.0
  %435 = vmatpush1.msra.mxu0 0.0
  %436 = vmatprep.subr.mxu0 0.0
  %437 = vmatpush1.msra.mxu0 0.0
  %438 = vmatprep.subr.mxu0 0.0
  %439 = vmatpush1.msra.mxu0 0.0
  %440 = vmatprep.subr.mxu0 0.0
  %441 = vmatpush1.msra.mxu0 0.0
  %442 = vmatprep.subr.mxu0 0.0
  %443 = vmatpush1.msra.mxu0 0.0
  %444 = vmatprep.subr.mxu0 0.0
  %445 = vmatpush1.msra.mxu0 0.0
  %446 = vmatprep.subr.mxu0 0.0
  %447 = vmatpush1.msra.mxu0 0.0
  %448 = vmatprep.subr.mxu0 0.0
  %449 = vmatpush1.msra.mxu0 0.0
  %450 = vmatprep.subr.mxu0 0.0
  %451 = vmatpush1.msra.mxu0 0.0
  %452 = vmatprep.subr.mxu0 0.0
  %453 = vmatpush1.msra.mxu0 0.0
  %454 = vmatprep.subr.mxu0 0.0
  %455 = vmatpush1.msra.mxu0 0.0
  %456 = vmatprep.subr.mxu0 0.0
  %457 = vmatpush1.msra.mxu0 0.0
  %458 = vmatprep.subr.mxu0 0.0
  %459 = vmatpush1.msra.mxu0 0.0
  %460 = vmatprep.subr.mxu0 0.0
  %461 = vmatpush1.msra.mxu0 0.0
  %462 = vmatprep.subr.mxu0 0.0
  %463 = vmatpush1.msra.mxu0 0.0
  %464 = vmatprep.subr.mxu0 0.0
  %465 = vmatpush1.msra.mxu0 0.0
  %466 = vmatprep.subr.mxu0 0.0
  %467 = vmatpush1.msra.mxu0 0.0
  %468 = vmatprep.subr.mxu0 0.0
  %469 = vmatpush1.msra.mxu0 0.0
  %470 = vmatprep.mubr.f32.mxu0 0.0
  %471 = vmatmul.mubr.f32.gmra.mrb[0].mxu0 %v404
  %v472 = vpop.f32.mrb[0].mxu0
  %v473 = vadd.f32 0.0, %v472
  %v474 = vpop.f32.mrb[0].mxu0
  %475 = vdwg.mxu0
  %v476 = vadd.f32 %v170, %v473
  %v477 = vxor.u32 %v476, 2147483648
  %v478 = vmul.f32 %v477, 1.442695
  %v479 = vpow.pop %v478
  %v480 = vadd.f32 %v479, 1.0
  %v481 = vrcp.pop %v480
  %v482 = vmul.f32 1.0, %v481
  %v483 = vtanh.pop %v476
  %v484 = vmul.f32 %v482, %v392
  %486 = vrot.lane.b32.xlu0 %v483, 32
  %v487 = vpop.permute.xlu0 %486
  %v489 = vmul.f32 %v482, %v487
  %491 = vrot.lane.b32.xlu0 %v489, 32
  %v492 = vpop.permute.xlu0 %491
  %v494 = vadd.f32 %v484, %v492
  %v495 = vtanh.pop %v494
  %497 = vrot.lane.b32.xlu0 %v495, 32
  %v498 = vpop.permute.xlu0 %497
  %v500 = vmul.f32 %v482, %v498
  %502 = vrot.lane.b32.xlu0 %v500, 64
  %v503 = vpop.permute.xlu0 %502
  %505 = vst.msk [vmem:[#allocation2 + $0x10] sm:$0xff] %vm198, %v503
  %v506 = vsel %vm198, %v503, 0
  %508 = vmatprep.subr.mxu0 0.0
  %509 = vmatpush1.msra.mxu0 %v53
  %510 = vmatprep.subr.mxu0 0.0
  %511 = vmatpush1.msra.mxu0 %v54
  %512 = vmatprep.subr.mxu0 0.0
  %513 = vmatpush1.msra.mxu0 %v55
  %514 = vmatprep.subr.mxu0 0.0
  %515 = vmatpush1.msra.mxu0 %v56
  %516 = vmatprep.subr.mxu0 0.0
  %517 = vmatpush1.msra.mxu0 0.0
  %518 = vmatprep.subr.mxu0 0.0
  %519 = vmatpush1.msra.mxu0 0.0
  %520 = vmatprep.subr.mxu0 0.0
  %521 = vmatpush1.msra.mxu0 0.0
  %522 = vmatprep.subr.mxu0 0.0
  %523 = vmatpush1.msra.mxu0 0.0
  %524 = vmatprep.subr.mxu0 0.0
  %525 = vmatpush1.msra.mxu0 0.0
  %526 = vmatprep.subr.mxu0 0.0
  %527 = vmatpush1.msra.mxu0 0.0
  %528 = vmatprep.subr.mxu0 0.0
  %529 = vmatpush1.msra.mxu0 0.0
  %530 = vmatprep.subr.mxu0 0.0
  %531 = vmatpush1.msra.mxu0 0.0
  %532 = vmatprep.subr.mxu0 0.0
  %533 = vmatpush1.msra.mxu0 0.0
  %534 = vmatprep.subr.mxu0 0.0
  %535 = vmatpush1.msra.mxu0 0.0
  %536 = vmatprep.subr.mxu0 0.0
  %537 = vmatpush1.msra.mxu0 0.0
  %538 = vmatprep.subr.mxu0 0.0
  %539 = vmatpush1.msra.mxu0 0.0
  %540 = vmatprep.subr.mxu0 0.0
  %541 = vmatpush1.msra.mxu0 0.0
  %542 = vmatprep.subr.mxu0 0.0
  %543 = vmatpush1.msra.mxu0 0.0
  %544 = vmatprep.subr.mxu0 0.0
  %545 = vmatpush1.msra.mxu0 0.0
  %546 = vmatprep.subr.mxu0 0.0
  %547 = vmatpush1.msra.mxu0 0.0
  %548 = vmatprep.subr.mxu0 0.0
  %549 = vmatpush1.msra.mxu0 0.0
  %550 = vmatprep.subr.mxu0 0.0
  %551 = vmatpush1.msra.mxu0 0.0
  %552 = vmatprep.subr.mxu0 0.0
  %553 = vmatpush1.msra.mxu0 0.0
  %554 = vmatprep.subr.mxu0 0.0
  %555 = vmatpush1.msra.mxu0 0.0
  %556 = vmatprep.subr.mxu0 0.0
  %557 = vmatpush1.msra.mxu0 0.0
  %558 = vmatprep.subr.mxu0 0.0
  %559 = vmatpush1.msra.mxu0 0.0
  %560 = vmatprep.subr.mxu0 0.0
  %561 = vmatpush1.msra.mxu0 0.0
  %562 = vmatprep.subr.mxu0 0.0
  %563 = vmatpush1.msra.mxu0 0.0
  %564 = vmatprep.subr.mxu0 0.0
  %565 = vmatpush1.msra.mxu0 0.0
  %566 = vmatprep.subr.mxu0 0.0
  %567 = vmatpush1.msra.mxu0 0.0
  %568 = vmatprep.subr.mxu0 0.0
  %569 = vmatpush1.msra.mxu0 0.0
  %570 = vmatprep.subr.mxu0 0.0
  %571 = vmatpush1.msra.mxu0 0.0
  %572 = vmatprep.mubr.f32.mxu0 0.0
  %573 = vmatmul.mubr.f32.gmra.mrb[0].mxu0 %v506
  %v574 = vpop.f32.mrb[0].mxu0
  %v575 = vadd.f32 0.0, %v574
  %v576 = vpop.f32.mrb[0].mxu0
  %577 = vdwg.mxu0
  %v578 = vadd.f32 %v175, %v575
  %v579 = vxor.u32 %v578, 2147483648
  %v580 = vmul.f32 %v579, 1.442695
  %v581 = vpow.pop %v580
  %v582 = vadd.f32 %v581, 1.0
  %v583 = vrcp.pop %v582
  %v584 = vmul.f32 1.0, %v583
  %v585 = vtanh.pop %v578
  %v586 = vmul.f32 %v584, %v494
  %588 = vrot.lane.b32.xlu0 %v585, 32
  %v589 = vpop.permute.xlu0 %588
  %v591 = vmul.f32 %v584, %v589
  %593 = vrot.lane.b32.xlu0 %v591, 32
  %v594 = vpop.permute.xlu0 %593
  %v596 = vadd.f32 %v586, %v594
  %v597 = vtanh.pop %v596
  %599 = vrot.lane.b32.xlu0 %v597, 32
  %v600 = vpop.permute.xlu0 %599
  %v602 = vmul.f32 %v584, %v600
  %604 = vrot.lane.b32.xlu0 %v602, 64
  %v605 = vpop.permute.xlu0 %604
  %607 = vst.msk [vmem:[#allocation2 + $0x18] sm:$0xff] %vm198, %v605
  %v608 = vsel %vm198, %v605, 0
  %610 = vmatprep.subr.mxu0 0.0
  %611 = vmatpush1.msra.mxu0 %v53
  %612 = vmatprep.subr.mxu0 0.0
  %613 = vmatpush1.msra.mxu0 %v54
  %614 = vmatprep.subr.mxu0 0.0
  %615 = vmatpush1.msra.mxu0 %v55
  %616 = vmatprep.subr.mxu0 0.0
  %617 = vmatpush1.msra.mxu0 %v56
  %618 = vmatprep.subr.mxu0 0.0
  %619 = vmatpush1.msra.mxu0 0.0
  %620 = vmatprep.subr.mxu0 0.0
  %621 = vmatpush1.msra.mxu0 0.0
  %622 = vmatprep.subr.mxu0 0.0
  %623 = vmatpush1.msra.mxu0 0.0
  %624 = vmatprep.subr.mxu0 0.0
  %625 = vmatpush1.msra.mxu0 0.0
  %626 = vmatprep.subr.mxu0 0.0
  %627 = vmatpush1.msra.mxu0 0.0
  %628 = vmatprep.subr.mxu0 0.0
  %629 = vmatpush1.msra.mxu0 0.0
  %630 = vmatprep.subr.mxu0 0.0
  %631 = vmatpush1.msra.mxu0 0.0
  %632 = vmatprep.subr.mxu0 0.0
  %633 = vmatpush1.msra.mxu0 0.0
  %634 = vmatprep.subr.mxu0 0.0
  %635 = vmatpush1.msra.mxu0 0.0
  %636 = vmatprep.subr.mxu0 0.0
  %637 = vmatpush1.msra.mxu0 0.0
  %638 = vmatprep.subr.mxu0 0.0
  %639 = vmatpush1.msra.mxu0 0.0
  %640 = vmatprep.subr.mxu0 0.0
  %641 = vmatpush1.msra.mxu0 0.0
  %642 = vmatprep.subr.mxu0 0.0
  %643 = vmatpush1.msra.mxu0 0.0
  %644 = vmatprep.subr.mxu0 0.0
  %645 = vmatpush1.msra.mxu0 0.0
  %646 = vmatprep.subr.mxu0 0.0
  %647 = vmatpush1.msra.mxu0 0.0
  %648 = vmatprep.subr.mxu0 0.0
  %649 = vmatpush1.msra.mxu0 0.0
  %650 = vmatprep.subr.mxu0 0.0
  %651 = vmatpush1.msra.mxu0 0.0
  %652 = vmatprep.subr.mxu0 0.0
  %653 = vmatpush1.msra.mxu0 0.0
  %654 = vmatprep.subr.mxu0 0.0
  %655 = vmatpush1.msra.mxu0 0.0
  %656 = vmatprep.subr.mxu0 0.0
  %657 = vmatpush1.msra.mxu0 0.0
  %658 = vmatprep.subr.mxu0 0.0
  %659 = vmatpush1.msra.mxu0 0.0
  %660 = vmatprep.subr.mxu0 0.0
  %661 = vmatpush1.msra.mxu0 0.0
  %662 = vmatprep.subr.mxu0 0.0
  %663 = vmatpush1.msra.mxu0 0.0
  %664 = vmatprep.subr.mxu0 0.0
  %665 = vmatpush1.msra.mxu0 0.0
  %666 = vmatprep.subr.mxu0 0.0
  %667 = vmatpush1.msra.mxu0 0.0
  %668 = vmatprep.subr.mxu0 0.0
  %669 = vmatpush1.msra.mxu0 0.0
  %670 = vmatprep.subr.mxu0 0.0
  %671 = vmatpush1.msra.mxu0 0.0
  %672 = vmatprep.subr.mxu0 0.0
  %673 = vmatpush1.msra.mxu0 0.0
  %674 = vmatprep.mubr.f32.mxu0 0.0
  %675 = vmatmul.mubr.f32.gmra.mrb[0].mxu0 %v608
  %v676 = vpop.f32.mrb[0].mxu0
  %v677 = vadd.f32 0.0, %v676
  %v678 = vpop.f32.mrb[0].mxu0
  %679 = vdwg.mxu0
  %v680 = vadd.f32 %v180, %v677
  %v681 = vxor.u32 %v680, 2147483648
  %v682 = vmul.f32 %v681, 1.442695
  %v683 = vpow.pop %v682
  %v684 = vadd.f32 %v683, 1.0
  %v685 = vrcp.pop %v684
  %v686 = vmul.f32 1.0, %v685
  %v687 = vtanh.pop %v680
  %v688 = vmul.f32 %v686, %v596
  %690 = vrot.lane.b32.xlu0 %v687, 32
  %v691 = vpop.permute.xlu0 %690
  %v693 = vmul.f32 %v686, %v691
  %695 = vrot.lane.b32.xlu0 %v693, 32
  %v696 = vpop.permute.xlu0 %695
  %v698 = vadd.f32 %v688, %v696
  %v699 = vtanh.pop %v698
  %701 = vrot.lane.b32.xlu0 %v699, 32
  %v702 = vpop.permute.xlu0 %701
  %v704 = vmul.f32 %v686, %v702
  %706 = vrot.lane.b32.xlu0 %v704, 64
  %v707 = vpop.permute.xlu0 %706
  %709 = vst.msk [vmem:[#allocation2 + $0x20] sm:$0xff] %vm198, %v707
  %v710 = vsel %vm198, %v707, 0
  %712 = vmatprep.subr.mxu0 0.0
  %713 = vmatpush1.msra.mxu0 %v53
  %714 = vmatprep.subr.mxu0 0.0
  %715 = vmatpush1.msra.mxu0 %v54
  %716 = vmatprep.subr.mxu0 0.0
  %717 = vmatpush1.msra.mxu0 %v55
  %718 = vmatprep.subr.mxu0 0.0
  %719 = vmatpush1.msra.mxu0 %v56
  %720 = vmatprep.subr.mxu0 0.0
  %721 = vmatpush1.msra.mxu0 0.0
  %722 = vmatprep.subr.mxu0 0.0
  %723 = vmatpush1.msra.mxu0 0.0
  %724 = vmatprep.subr.mxu0 0.0
  %725 = vmatpush1.msra.mxu0 0.0
  %726 = vmatprep.subr.mxu0 0.0
  %727 = vmatpush1.msra.mxu0 0.0
  %728 = vmatprep.subr.mxu0 0.0
  %729 = vmatpush1.msra.mxu0 0.0
  %730 = vmatprep.subr.mxu0 0.0
  %731 = vmatpush1.msra.mxu0 0.0
  %732 = vmatprep.subr.mxu0 0.0
  %733 = vmatpush1.msra.mxu0 0.0
  %734 = vmatprep.subr.mxu0 0.0
  %735 = vmatpush1.msra.mxu0 0.0
  %736 = vmatprep.subr.mxu0 0.0
  %737 = vmatpush1.msra.mxu0 0.0
  %738 = vmatprep.subr.mxu0 0.0
  %739 = vmatpush1.msra.mxu0 0.0
  %740 = vmatprep.subr.mxu0 0.0
  %741 = vmatpush1.msra.mxu0 0.0
  %742 = vmatprep.subr.mxu0 0.0
  %743 = vmatpush1.msra.mxu0 0.0
  %744 = vmatprep.subr.mxu0 0.0
  %745 = vmatpush1.msra.mxu0 0.0
  %746 = vmatprep.subr.mxu0 0.0
  %747 = vmatpush1.msra.mxu0 0.0
  %748 = vmatprep.subr.mxu0 0.0
  %749 = vmatpush1.msra.mxu0 0.0
  %750 = vmatprep.subr.mxu0 0.0
  %751 = vmatpush1.msra.mxu0 0.0
  %752 = vmatprep.subr.mxu0 0.0
  %753 = vmatpush1.msra.mxu0 0.0
  %754 = vmatprep.subr.mxu0 0.0
  %755 = vmatpush1.msra.mxu0 0.0
  %756 = vmatprep.subr.mxu0 0.0
  %757 = vmatpush1.msra.mxu0 0.0
  %758 = vmatprep.subr.mxu0 0.0
  %759 = vmatpush1.msra.mxu0 0.0
  %760 = vmatprep.subr.mxu0 0.0
  %761 = vmatpush1.msra.mxu0 0.0
  %762 = vmatprep.subr.mxu0 0.0
  %763 = vmatpush1.msra.mxu0 0.0
  %764 = vmatprep.subr.mxu0 0.0
  %765 = vmatpush1.msra.mxu0 0.0
  %766 = vmatprep.subr.mxu0 0.0
  %767 = vmatpush1.msra.mxu0 0.0
  %768 = vmatprep.subr.mxu0 0.0
  %769 = vmatpush1.msra.mxu0 0.0
  %770 = vmatprep.subr.mxu0 0.0
  %771 = vmatpush1.msra.mxu0 0.0
  %772 = vmatprep.subr.mxu0 0.0
  %773 = vmatpush1.msra.mxu0 0.0
  %774 = vmatprep.subr.mxu0 0.0
  %775 = vmatpush1.msra.mxu0 0.0
  %776 = vmatprep.mubr.f32.mxu0 0.0
  %777 = vmatmul.mubr.f32.gmra.mrb[0].mxu0 %v710
  %v778 = vpop.f32.mrb[0].mxu0
  %v779 = vadd.f32 0.0, %v778
  %v780 = vpop.f32.mrb[0].mxu0
  %781 = vdwg.mxu0
  %v782 = vadd.f32 %v185, %v779
  %v783 = vxor.u32 %v782, 2147483648
  %v784 = vmul.f32 %v783, 1.442695
  %v785 = vpow.pop %v784
  %v786 = vadd.f32 %v785, 1.0
  %v787 = vrcp.pop %v786
  %v788 = vmul.f32 1.0, %v787
  %v789 = vtanh.pop %v782
  %v790 = vmul.f32 %v788, %v698
  %792 = vrot.lane.b32.xlu0 %v789, 32
  %v793 = vpop.permute.xlu0 %792
  %v795 = vmul.f32 %v788, %v793
  %797 = vrot.lane.b32.xlu0 %v795, 32
  %v798 = vpop.permute.xlu0 %797
  %v800 = vadd.f32 %v790, %v798
  %v801 = vtanh.pop %v800
  %803 = vrot.lane.b32.xlu0 %v801, 32
  %v804 = vpop.permute.xlu0 %803
  %v806 = vmul.f32 %v788, %v804
  %808 = vrot.lane.b32.xlu0 %v806, 64
  %v809 = vpop.permute.xlu0 %808
  %811 = vst.msk [vmem:[#allocation2 + $0x28] sm:$0xff] %vm198, %v809
  %v812 = vsel %vm198, %v809, 0
  %814 = vmatprep.subr.mxu0 0.0
  %815 = vmatpush1.msra.mxu0 %v53
  %816 = vmatprep.subr.mxu0 0.0
  %817 = vmatpush1.msra.mxu0 %v54
  %818 = vmatprep.subr.mxu0 0.0
  %819 = vmatpush1.msra.mxu0 %v55
  %820 = vmatprep.subr.mxu0 0.0
  %821 = vmatpush1.msra.mxu0 %v56
  %822 = vmatprep.subr.mxu0 0.0
  %823 = vmatpush1.msra.mxu0 0.0
  %824 = vmatprep.subr.mxu0 0.0
  %825 = vmatpush1.msra.mxu0 0.0
  %826 = vmatprep.subr.mxu0 0.0
  %827 = vmatpush1.msra.mxu0 0.0
  %828 = vmatprep.subr.mxu0 0.0
  %829 = vmatpush1.msra.mxu0 0.0
  %830 = vmatprep.subr.mxu0 0.0
  %831 = vmatpush1.msra.mxu0 0.0
  %832 = vmatprep.subr.mxu0 0.0
  %833 = vmatpush1.msra.mxu0 0.0
  %834 = vmatprep.subr.mxu0 0.0
  %835 = vmatpush1.msra.mxu0 0.0
  %836 = vmatprep.subr.mxu0 0.0
  %837 = vmatpush1.msra.mxu0 0.0
  %838 = vmatprep.subr.mxu0 0.0
  %839 = vmatpush1.msra.mxu0 0.0
  %840 = vmatprep.subr.mxu0 0.0
  %841 = vmatpush1.msra.mxu0 0.0
  %842 = vmatprep.subr.mxu0 0.0
  %843 = vmatpush1.msra.mxu0 0.0
  %844 = vmatprep.subr.mxu0 0.0
  %845 = vmatpush1.msra.mxu0 0.0
  %846 = vmatprep.subr.mxu0 0.0
  %847 = vmatpush1.msra.mxu0 0.0
  %848 = vmatprep.subr.mxu0 0.0
  %849 = vmatpush1.msra.mxu0 0.0
  %850 = vmatprep.subr.mxu0 0.0
  %851 = vmatpush1.msra.mxu0 0.0
  %852 = vmatprep.subr.mxu0 0.0
  %853 = vmatpush1.msra.mxu0 0.0
  %854 = vmatprep.subr.mxu0 0.0
  %855 = vmatpush1.msra.mxu0 0.0
  %856 = vmatprep.subr.mxu0 0.0
  %857 = vmatpush1.msra.mxu0 0.0
  %858 = vmatprep.subr.mxu0 0.0
  %859 = vmatpush1.msra.mxu0 0.0
  %860 = vmatprep.subr.mxu0 0.0
  %861 = vmatpush1.msra.mxu0 0.0
  %862 = vmatprep.subr.mxu0 0.0
  %863 = vmatpush1.msra.mxu0 0.0
  %864 = vmatprep.subr.mxu0 0.0
  %865 = vmatpush1.msra.mxu0 0.0
  %866 = vmatprep.subr.mxu0 0.0
  %867 = vmatpush1.msra.mxu0 0.0
  %868 = vmatprep.subr.mxu0 0.0
  %869 = vmatpush1.msra.mxu0 0.0
  %870 = vmatprep.subr.mxu0 0.0
  %871 = vmatpush1.msra.mxu0 0.0
  %872 = vmatprep.subr.mxu0 0.0
  %873 = vmatpush1.msra.mxu0 0.0
  %874 = vmatprep.subr.mxu0 0.0
  %875 = vmatpush1.msra.mxu0 0.0
  %876 = vmatprep.subr.mxu0 0.0
  %877 = vmatpush1.msra.mxu0 0.0
  %878 = vmatprep.mubr.f32.mxu0 0.0
  %879 = vmatmul.mubr.f32.gmra.mrb[0].mxu0 %v812
  %v880 = vpop.f32.mrb[0].mxu0
  %v881 = vadd.f32 0.0, %v880
  %v882 = vpop.f32.mrb[0].mxu0
  %883 = vdwg.mxu0
  %v884 = vadd.f32 %v190, %v881
  %v885 = vxor.u32 %v884, 2147483648
  %v886 = vmul.f32 %v885, 1.442695
  %v887 = vpow.pop %v886
  %v888 = vadd.f32 %v887, 1.0
  %v889 = vrcp.pop %v888
  %v890 = vmul.f32 1.0, %v889
  %v891 = vtanh.pop %v884
  %v892 = vmul.f32 %v890, %v800
  %894 = vrot.lane.b32.xlu0 %v891, 32
  %v895 = vpop.permute.xlu0 %894
  %v897 = vmul.f32 %v890, %v895
  %899 = vrot.lane.b32.xlu0 %v897, 32
  %v900 = vpop.permute.xlu0 %899
  %v902 = vadd.f32 %v892, %v900
  %v903 = vtanh.pop %v902
  %905 = vrot.lane.b32.xlu0 %v903, 32
  %v906 = vpop.permute.xlu0 %905
  %v908 = vmul.f32 %v890, %v906
  %910 = vrot.lane.b32.xlu0 %v908, 64
  %v911 = vpop.permute.xlu0 %910
  %913 = vst.msk [vmem:[#allocation2 + $0x30] sm:$0xff] %vm198, %v911
  %v914 = vsel %vm198, %v911, 0
  %916 = vmatprep.subr.mxu0 0.0
  %917 = vmatpush1.msra.mxu0 %v53
  %918 = vmatprep.subr.mxu0 0.0
  %919 = vmatpush1.msra.mxu0 %v54
  %920 = vmatprep.subr.mxu0 0.0
  %921 = vmatpush1.msra.mxu0 %v55
  %922 = vmatprep.subr.mxu0 0.0
  %923 = vmatpush1.msra.mxu0 %v56
  %924 = vmatprep.subr.mxu0 0.0
  %925 = vmatpush1.msra.mxu0 0.0
  %926 = vmatprep.subr.mxu0 0.0
  %927 = vmatpush1.msra.mxu0 0.0
  %928 = vmatprep.subr.mxu0 0.0
  %929 = vmatpush1.msra.mxu0 0.0
  %930 = vmatprep.subr.mxu0 0.0
  %931 = vmatpush1.msra.mxu0 0.0
  %932 = vmatprep.subr.mxu0 0.0
  %933 = vmatpush1.msra.mxu0 0.0
  %934 = vmatprep.subr.mxu0 0.0
  %935 = vmatpush1.msra.mxu0 0.0
  %936 = vmatprep.subr.mxu0 0.0
  %937 = vmatpush1.msra.mxu0 0.0
  %938 = vmatprep.subr.mxu0 0.0
  %939 = vmatpush1.msra.mxu0 0.0
  %940 = vmatprep.subr.mxu0 0.0
  %941 = vmatpush1.msra.mxu0 0.0
  %942 = vmatprep.subr.mxu0 0.0
  %943 = vmatpush1.msra.mxu0 0.0
  %944 = vmatprep.subr.mxu0 0.0
  %945 = vmatpush1.msra.mxu0 0.0
  %946 = vmatprep.subr.mxu0 0.0
  %947 = vmatpush1.msra.mxu0 0.0
  %948 = vmatprep.subr.mxu0 0.0
  %949 = vmatpush1.msra.mxu0 0.0
  %950 = vmatprep.subr.mxu0 0.0
  %951 = vmatpush1.msra.mxu0 0.0
  %952 = vmatprep.subr.mxu0 0.0
  %953 = vmatpush1.msra.mxu0 0.0
  %954 = vmatprep.subr.mxu0 0.0
  %955 = vmatpush1.msra.mxu0 0.0
  %956 = vmatprep.subr.mxu0 0.0
  %957 = vmatpush1.msra.mxu0 0.0
  %958 = vmatprep.subr.mxu0 0.0
  %959 = vmatpush1.msra.mxu0 0.0
  %960 = vmatprep.subr.mxu0 0.0
  %961 = vmatpush1.msra.mxu0 0.0
  %962 = vmatprep.subr.mxu0 0.0
  %963 = vmatpush1.msra.mxu0 0.0
  %964 = vmatprep.subr.mxu0 0.0
  %965 = vmatpush1.msra.mxu0 0.0
  %966 = vmatprep.subr.mxu0 0.0
  %967 = vmatpush1.msra.mxu0 0.0
  %968 = vmatprep.subr.mxu0 0.0
  %969 = vmatpush1.msra.mxu0 0.0
  %970 = vmatprep.subr.mxu0 0.0
  %971 = vmatpush1.msra.mxu0 0.0
  %972 = vmatprep.subr.mxu0 0.0
  %973 = vmatpush1.msra.mxu0 0.0
  %974 = vmatprep.subr.mxu0 0.0
  %975 = vmatpush1.msra.mxu0 0.0
  %976 = vmatprep.subr.mxu0 0.0
  %977 = vmatpush1.msra.mxu0 0.0
  %978 = vmatprep.subr.mxu0 0.0
  %979 = vmatpush1.msra.mxu0 0.0
  %980 = vmatprep.mubr.f32.mxu0 0.0
  %981 = vmatmul.mubr.f32.gmra.mrb[0].mxu0 %v914
  %v982 = vpop.f32.mrb[0].mxu0
  %v983 = vadd.f32 0.0, %v982
  %v984 = vpop.f32.mrb[0].mxu0
  %985 = vdwg.mxu0
  %v986 = vadd.f32 %v195, %v983
  %v987 = vxor.u32 %v986, 2147483648
  %v988 = vmul.f32 %v987, 1.442695
  %v989 = vpow.pop %v988
  %v990 = vadd.f32 %v989, 1.0
  %v991 = vrcp.pop %v990
  %v992 = vmul.f32 1.0, %v991
  %v993 = vtanh.pop %v986
  %v994 = vmul.f32 %v992, %v902
  %996 = vrot.lane.b32.xlu0 %v993, 32
  %v997 = vpop.permute.xlu0 %996
  %v999 = vmul.f32 %v992, %v997
  %1001 = vrot.lane.b32.xlu0 %v999, 32
  %v1002 = vpop.permute.xlu0 %1001
  %v1004 = vadd.f32 %v994, %v1002
  %v1005 = vtanh.pop %v1004
  %1007 = vrot.lane.b32.xlu0 %v1005, 32
  %v1008 = vpop.permute.xlu0 %1007
  %v1010 = vmul.f32 %v992, %v1008
  %1012 = vrot.lane.b32.xlu0 %v1010, 64
  %v1013 = vpop.permute.xlu0 %1012
  %1015 = vst.msk [vmem:[#allocation2 + $0x38] sm:$0xff] %vm198, %v1013
  %v1016 = vld [vmem:[#allocation2] sm:$0xff]
  %v1017 = vld [vmem:[#allocation2 + $0x8] sm:$0xff]
  %v1018 = vld [vmem:[#allocation2 + $0x10] sm:$0xff]
  %v1019 = vld [vmem:[#allocation2 + $0x18] sm:$0xff]
  %v1020 = vld [vmem:[#allocation2 + $0x20] sm:$0xff]
  %v1021 = vld [vmem:[#allocation2 + $0x28] sm:$0xff]
  %v1022 = vld [vmem:[#allocation2 + $0x30] sm:$0xff]
  %v1023 = vld [vmem:[#allocation2 + $0x38] sm:$0xff]
  %v1024 = vld [vmem:[%s4] sm:$0xff]
  %v1025 = vld [vmem:[%s4 + $0x8] sm:$0xff]
  %v1026 = vld [vmem:[%s4 + $0x10] sm:$0xff]
  %v1027 = vld [vmem:[%s4 + $0x18] sm:$0xff]
  %v1028 = vld [vmem:[%s5] sm:$0xff]
  %v1029 = vld [vmem:[%s5 + $0x8] sm:$0xff]
  %v1030 = vld [vmem:[%s5 + $0x10] sm:$0xff]
  %v1031 = vld [vmem:[%s5 + $0x18] sm:$0xff]
  %v1032 = vld [vmem:[%s6] sm:$0x1]
  %v1034 = vlaneseq
  %v1035 = vshrl.u32 %v1034, 7
  %v1036 = vsub.s32 0, %v1035
  %v1037 = vrot.slane %v1032, %v1036
  %v1040 = vsel %vm198, %v1016, 0
  %v1043 = vsel %vm198, %v1017, 0
  %v1046 = vsel %vm198, %v1018, 0
  %v1049 = vsel %vm198, %v1019, 0
  %v1052 = vsel %vm198, %v1020, 0
  %v1055 = vsel %vm198, %v1021, 0
  %v1058 = vsel %vm198, %v1022, 0
  %v1061 = vsel %vm198, %v1023, 0
  %1063 = vmatprep.subr.mxu0 0.0
  %1064 = vmatpush1.msra.mxu0 %v1024
  %1065 = vmatprep.subr.mxu0 0.0
  %1066 = vmatpush1.msra.mxu0 %v1025
  %1067 = vmatprep.subr.mxu0 0.0
  %1068 = vmatpush1.msra.mxu0 %v1026
  %1069 = vmatprep.subr.mxu0 0.0
  %1070 = vmatpush1.msra.mxu0 %v1027
  %1071 = vmatprep.subr.mxu0 0.0
  %1072 = vmatpush1.msra.mxu0 0.0
  %1073 = vmatprep.subr.mxu0 0.0
  %1074 = vmatpush1.msra.mxu0 0.0
  %1075 = vmatprep.subr.mxu0 0.0
  %1076 = vmatpush1.msra.mxu0 0.0
  %1077 = vmatprep.subr.mxu0 0.0
  %1078 = vmatpush1.msra.mxu0 0.0
  %1079 = vmatprep.subr.mxu0 0.0
  %1080 = vmatpush1.msra.mxu0 0.0
  %1081 = vmatprep.subr.mxu0 0.0
  %1082 = vmatpush1.msra.mxu0 0.0
  %1083 = vmatprep.subr.mxu0 0.0
  %1084 = vmatpush1.msra.mxu0 0.0
  %1085 = vmatprep.subr.mxu0 0.0
  %1086 = vmatpush1.msra.mxu0 0.0
  %1087 = vmatprep.subr.mxu0 0.0
  %1088 = vmatpush1.msra.mxu0 0.0
  %1089 = vmatprep.subr.mxu0 0.0
  %1090 = vmatpush1.msra.mxu0 0.0
  %1091 = vmatprep.subr.mxu0 0.0
  %1092 = vmatpush1.msra.mxu0 0.0
  %1093 = vmatprep.subr.mxu0 0.0
  %1094 = vmatpush1.msra.mxu0 0.0
  %1095 = vmatprep.subr.mxu0 0.0
  %1096 = vmatpush1.msra.mxu0 0.0
  %1097 = vmatprep.subr.mxu0 0.0
  %1098 = vmatpush1.msra.mxu0 0.0
  %1099 = vmatprep.subr.mxu0 0.0
  %1100 = vmatpush1.msra.mxu0 0.0
  %1101 = vmatprep.subr.mxu0 0.0
  %1102 = vmatpush1.msra.mxu0 0.0
  %1103 = vmatprep.subr.mxu0 0.0
  %1104 = vmatpush1.msra.mxu0 0.0
  %1105 = vmatprep.subr.mxu0 0.0
  %1106 = vmatpush1.msra.mxu0 0.0
  %1107 = vmatprep.subr.mxu0 0.0
  %1108 = vmatpush1.msra.mxu0 0.0
  %1109 = vmatprep.subr.mxu0 0.0
  %1110 = vmatpush1.msra.mxu0 0.0
  %1111 = vmatprep.subr.mxu0 0.0
  %1112 = vmatpush1.msra.mxu0 0.0
  %1113 = vmatprep.subr.mxu0 0.0
  %1114 = vmatpush1.msra.mxu0 0.0
  %1115 = vmatprep.subr.mxu0 0.0
  %1116 = vmatpush1.msra.mxu0 0.0
  %1117 = vmatprep.subr.mxu0 0.0
  %1118 = vmatpush1.msra.mxu0 0.0
  %1119 = vmatprep.subr.mxu0 0.0
  %1120 = vmatpush1.msra.mxu0 0.0
  %1121 = vmatprep.subr.mxu0 0.0
  %1122 = vmatpush1.msra.mxu0 0.0
  %1123 = vmatprep.subr.mxu0 0.0
  %1124 = vmatpush1.msra.mxu0 0.0
  %1125 = vmatprep.subr.mxu0 0.0
  %1126 = vmatpush1.msra.mxu0 0.0
  %1127 = vmatprep.mubr.f32.mxu0 0.0
  %1128 = vmatmul.mubr.f32.gmra.mrb[0].mxu0 %v1040
  %v1129 = vpop.f32.mrb[0].mxu0
  %v1130 = vadd.f32 %v1037, %v1129
  %v1131 = vpop.f32.mrb[0].mxu0
  %1132 = vmatprep.mubr.f32.mxu0 0.0
  %1133 = vmatmul.mubr.f32.gmra.mrb[0].mxu0 %v1043
  %v1134 = vpop.f32.mrb[0].mxu0
  %v1135 = vadd.f32 %v1037, %v1134
  %v1136 = vpop.f32.mrb[0].mxu0
  %1137 = vmatprep.mubr.f32.mxu0 0.0
  %1138 = vmatmul.mubr.f32.gmra.mrb[0].mxu0 %v1046
  %v1139 = vpop.f32.mrb[0].mxu0
  %v1140 = vadd.f32 %v1037, %v1139
  %v1141 = vpop.f32.mrb[0].mxu0
  %1142 = vmatprep.mubr.f32.mxu0 0.0
  %1143 = vmatmul.mubr.f32.gmra.mrb[0].mxu0 %v1049
  %v1144 = vpop.f32.mrb[0].mxu0
  %v1145 = vadd.f32 %v1037, %v1144
  %v1146 = vpop.f32.mrb[0].mxu0
  %1147 = vmatprep.mubr.f32.mxu0 0.0
  %1148 = vmatmul.mubr.f32.gmra.mrb[0].mxu0 %v1052
  %v1149 = vpop.f32.mrb[0].mxu0
  %v1150 = vadd.f32 %v1037, %v1149
  %v1151 = vpop.f32.mrb[0].mxu0
  %1152 = vmatprep.mubr.f32.mxu0 0.0
  %1153 = vmatmul.mubr.f32.gmra.mrb[0].mxu0 %v1055
  %v1154 = vpop.f32.mrb[0].mxu0
  %v1155 = vadd.f32 %v1037, %v1154
  %v1156 = vpop.f32.mrb[0].mxu0
  %1157 = vmatprep.mubr.f32.mxu0 0.0
  %1158 = vmatmul.mubr.f32.gmra.mrb[0].mxu0 %v1058
  %v1159 = vpop.f32.mrb[0].mxu0
  %v1160 = vadd.f32 %v1037, %v1159
  %v1161 = vpop.f32.mrb[0].mxu0
  %1162 = vmatprep.mubr.f32.mxu0 0.0
  %1163 = vmatmul.mubr.f32.gmra.mrb[0].mxu0 %v1061
  %v1164 = vpop.f32.mrb[0].mxu0
  %v1165 = vadd.f32 %v1037, %v1164
  %v1166 = vpop.f32.mrb[0].mxu0
  %1167 = vdwg.mxu0
  %1168 = vmatprep.subr.mxu0 0.0
  %1169 = vmatpush1.msra.mxu0 %v1028
  %1170 = vmatprep.subr.mxu0 0.0
  %1171 = vmatpush1.msra.mxu0 %v1029
  %1172 = vmatprep.subr.mxu0 0.0
  %1173 = vmatpush1.msra.mxu0 %v1030
  %1174 = vmatprep.subr.mxu0 0.0
  %1175 = vmatpush1.msra.mxu0 %v1031
  %1176 = vmatprep.subr.mxu0 0.0
  %1177 = vmatpush1.msra.mxu0 0.0
  %1178 = vmatprep.subr.mxu0 0.0
  %1179 = vmatpush1.msra.mxu0 0.0
  %1180 = vmatprep.subr.mxu0 0.0
  %1181 = vmatpush1.msra.mxu0 0.0
  %1182 = vmatprep.subr.mxu0 0.0
  %1183 = vmatpush1.msra.mxu0 0.0
  %1184 = vmatprep.subr.mxu0 0.0
  %1185 = vmatpush1.msra.mxu0 0.0
  %1186 = vmatprep.subr.mxu0 0.0
  %1187 = vmatpush1.msra.mxu0 0.0
  %1188 = vmatprep.subr.mxu0 0.0
  %1189 = vmatpush1.msra.mxu0 0.0
  %1190 = vmatprep.subr.mxu0 0.0
  %1191 = vmatpush1.msra.mxu0 0.0
  %1192 = vmatprep.subr.mxu0 0.0
  %1193 = vmatpush1.msra.mxu0 0.0
  %1194 = vmatprep.subr.mxu0 0.0
  %1195 = vmatpush1.msra.mxu0 0.0
  %1196 = vmatprep.subr.mxu0 0.0
  %1197 = vmatpush1.msra.mxu0 0.0
  %1198 = vmatprep.subr.mxu0 0.0
  %1199 = vmatpush1.msra.mxu0 0.0
  %1200 = vmatprep.subr.mxu0 0.0
  %1201 = vmatpush1.msra.mxu0 0.0
  %1202 = vmatprep.subr.mxu0 0.0
  %1203 = vmatpush1.msra.mxu0 0.0
  %1204 = vmatprep.subr.mxu0 0.0
  %1205 = vmatpush1.msra.mxu0 0.0
  %1206 = vmatprep.subr.mxu0 0.0
  %1207 = vmatpush1.msra.mxu0 0.0
  %1208 = vmatprep.subr.mxu0 0.0
  %1209 = vmatpush1.msra.mxu0 0.0
  %1210 = vmatprep.subr.mxu0 0.0
  %1211 = vmatpush1.msra.mxu0 0.0
  %1212 = vmatprep.subr.mxu0 0.0
  %1213 = vmatpush1.msra.mxu0 0.0
  %1214 = vmatprep.subr.mxu0 0.0
  %1215 = vmatpush1.msra.mxu0 0.0
  %1216 = vmatprep.subr.mxu0 0.0
  %1217 = vmatpush1.msra.mxu0 0.0
  %1218 = vmatprep.subr.mxu0 0.0
  %1219 = vmatpush1.msra.mxu0 0.0
  %1220 = vmatprep.subr.mxu0 0.0
  %1221 = vmatpush1.msra.mxu0 0.0
  %1222 = vmatprep.subr.mxu0 0.0
  %1223 = vmatpush1.msra.mxu0 0.0
  %1224 = vmatprep.subr.mxu0 0.0
  %1225 = vmatpush1.msra.mxu0 0.0
  %1226 = vmatprep.subr.mxu0 0.0
  %1227 = vmatpush1.msra.mxu0 0.0
  %1228 = vmatprep.subr.mxu0 0.0
  %1229 = vmatpush1.msra.mxu0 0.0
  %1230 = vmatprep.subr.mxu0 0.0
  %1231 = vmatpush1.msra.mxu0 0.0
  %1232 = vmatprep.mubr.f32.mxu0 0.0
  %1233 = vmatmul.mubr.f32.gmra.mrb[0].mxu0 %v200
  %v1234 = vpop.f32.mrb[0].mxu0
  %v1235 = vadd.f32 0.0, %v1234
  %v1236 = vpop.f32.mrb[0].mxu0
  %1237 = vdwg.mxu0
  %v1238 = vadd.f32 %v1130, %v1235
  %v1239 = vxor.u32 %v1238, 2147483648
  %v1240 = vmul.f32 %v1239, 1.442695
  %v1241 = vpow.pop %v1240
  %v1242 = vadd.f32 %v1241, 1.0
  %v1243 = vrcp.pop %v1242
  %v1244 = vmul.f32 1.0, %v1243
  %v1245 = vtanh.pop %v1238
  %v1246 = vmul.f32 %v1244, 0.0
  %1248 = vrot.lane.b32.xlu0 %v1245, 32
  %v1249 = vpop.permute.xlu0 %1248
  %v1251 = vmul.f32 %v1244, %v1249
  %1253 = vrot.lane.b32.xlu0 %v1251, 32
  %v1254 = vpop.permute.xlu0 %1253
  %v1256 = vadd.f32 %v1246, %v1254
  %v1257 = vtanh.pop %v1256
  %1259 = vrot.lane.b32.xlu0 %v1257, 32
  %v1260 = vpop.permute.xlu0 %1259
  %v1262 = vmul.f32 %v1244, %v1260
  %1264 = vrot.lane.b32.xlu0 %v1262, 64
  %v1265 = vpop.permute.xlu0 %1264
  %v1266 = vsel %vm198, %v1265, 0
  %1268 = vmatprep.subr.mxu0 0.0
  %1269 = vmatpush1.msra.mxu0 %v1028
  %1270 = vmatprep.subr.mxu0 0.0
  %1271 = vmatpush1.msra.mxu0 %v1029
  %1272 = vmatprep.subr.mxu0 0.0
  %1273 = vmatpush1.msra.mxu0 %v1030
  %1274 = vmatprep.subr.mxu0 0.0
  %1275 = vmatpush1.msra.mxu0 %v1031
  %1276 = vmatprep.subr.mxu0 0.0
  %1277 = vmatpush1.msra.mxu0 0.0
  %1278 = vmatprep.subr.mxu0 0.0
  %1279 = vmatpush1.msra.mxu0 0.0
  %1280 = vmatprep.subr.mxu0 0.0
  %1281 = vmatpush1.msra.mxu0 0.0
  %1282 = vmatprep.subr.mxu0 0.0
  %1283 = vmatpush1.msra.mxu0 0.0
  %1284 = vmatprep.subr.mxu0 0.0
  %1285 = vmatpush1.msra.mxu0 0.0
  %1286 = vmatprep.subr.mxu0 0.0
  %1287 = vmatpush1.msra.mxu0 0.0
  %1288 = vmatprep.subr.mxu0 0.0
  %1289 = vmatpush1.msra.mxu0 0.0
  %1290 = vmatprep.subr.mxu0 0.0
  %1291 = vmatpush1.msra.mxu0 0.0
  %1292 = vmatprep.subr.mxu0 0.0
  %1293 = vmatpush1.msra.mxu0 0.0
  %1294 = vmatprep.subr.mxu0 0.0
  %1295 = vmatpush1.msra.mxu0 0.0
  %1296 = vmatprep.subr.mxu0 0.0
  %1297 = vmatpush1.msra.mxu0 0.0
  %1298 = vmatprep.subr.mxu0 0.0
  %1299 = vmatpush1.msra.mxu0 0.0
  %1300 = vmatprep.subr.mxu0 0.0
  %1301 = vmatpush1.msra.mxu0 0.0
  %1302 = vmatprep.subr.mxu0 0.0
  %1303 = vmatpush1.msra.mxu0 0.0
  %1304 = vmatprep.subr.mxu0 0.0
  %1305 = vmatpush1.msra.mxu0 0.0
  %1306 = vmatprep.subr.mxu0 0.0
  %1307 = vmatpush1.msra.mxu0 0.0
  %1308 = vmatprep.subr.mxu0 0.0
  %1309 = vmatpush1.msra.mxu0 0.0
  %1310 = vmatprep.subr.mxu0 0.0
  %1311 = vmatpush1.msra.mxu0 0.0
  %1312 = vmatprep.subr.mxu0 0.0
  %1313 = vmatpush1.msra.mxu0 0.0
  %1314 = vmatprep.subr.mxu0 0.0
  %1315 = vmatpush1.msra.mxu0 0.0
  %1316 = vmatprep.subr.mxu0 0.0
  %1317 = vmatpush1.msra.mxu0 0.0
  %1318 = vmatprep.subr.mxu0 0.0
  %1319 = vmatpush1.msra.mxu0 0.0
  %1320 = vmatprep.subr.mxu0 0.0
  %1321 = vmatpush1.msra.mxu0 0.0
  %1322 = vmatprep.subr.mxu0 0.0
  %1323 = vmatpush1.msra.mxu0 0.0
  %1324 = vmatprep.subr.mxu0 0.0
  %1325 = vmatpush1.msra.mxu0 0.0
  %1326 = vmatprep.subr.mxu0 0.0
  %1327 = vmatpush1.msra.mxu0 0.0
  %1328 = vmatprep.subr.mxu0 0.0
  %1329 = vmatpush1.msra.mxu0 0.0
  %1330 = vmatprep.subr.mxu0 0.0
  %1331 = vmatpush1.msra.mxu0 0.0
  %1332 = vmatprep.mubr.f32.mxu0 0.0
  %1333 = vmatmul.mubr.f32.gmra.mrb[0].mxu0 %v1266
  %v1334 = vpop.f32.mrb[0].mxu0
  %v1335 = vadd.f32 0.0, %v1334
  %v1336 = vpop.f32.mrb[0].mxu0
  %1337 = vdwg.mxu0
  %v1338 = vadd.f32 %v1135, %v1335
  %v1339 = vxor.u32 %v1338, 2147483648
  %v1340 = vmul.f32 %v1339, 1.442695
  %v1341 = vpow.pop %v1340
  %v1342 = vadd.f32 %v1341, 1.0
  %v1343 = vrcp.pop %v1342
  %v1344 = vmul.f32 1.0, %v1343
  %v1345 = vtanh.pop %v1338
  %v1346 = vmul.f32 %v1344, %v1256
  %1348 = vrot.lane.b32.xlu0 %v1345, 32
  %v1349 = vpop.permute.xlu0 %1348
  %v1351 = vmul.f32 %v1344, %v1349
  %1353 = vrot.lane.b32.xlu0 %v1351, 32
  %v1354 = vpop.permute.xlu0 %1353
  %v1356 = vadd.f32 %v1346, %v1354
  %v1357 = vtanh.pop %v1356
  %1359 = vrot.lane.b32.xlu0 %v1357, 32
  %v1360 = vpop.permute.xlu0 %1359
  %v1362 = vmul.f32 %v1344, %v1360
  %1364 = vrot.lane.b32.xlu0 %v1362, 64
  %v1365 = vpop.permute.xlu0 %1364
  %v1366 = vsel %vm198, %v1365, 0
  %1368 = vmatprep.subr.mxu0 0.0
  %1369 = vmatpush1.msra.mxu0 %v1028
  %1370 = vmatprep.subr.mxu0 0.0
  %1371 = vmatpush1.msra.mxu0 %v1029
  %1372 = vmatprep.subr.mxu0 0.0
  %1373 = vmatpush1.msra.mxu0 %v1030
  %1374 = vmatprep.subr.mxu0 0.0
  %1375 = vmatpush1.msra.mxu0 %v1031
  %1376 = vmatprep.subr.mxu0 0.0
  %1377 = vmatpush1.msra.mxu0 0.0
  %1378 = vmatprep.subr.mxu0 0.0
  %1379 = vmatpush1.msra.mxu0 0.0
  %1380 = vmatprep.subr.mxu0 0.0
  %1381 = vmatpush1.msra.mxu0 0.0
  %1382 = vmatprep.subr.mxu0 0.0
  %1383 = vmatpush1.msra.mxu0 0.0
  %1384 = vmatprep.subr.mxu0 0.0
  %1385 = vmatpush1.msra.mxu0 0.0
  %1386 = vmatprep.subr.mxu0 0.0
  %1387 = vmatpush1.msra.mxu0 0.0
  %1388 = vmatprep.subr.mxu0 0.0
  %1389 = vmatpush1.msra.mxu0 0.0
  %1390 = vmatprep.subr.mxu0 0.0
  %1391 = vmatpush1.msra.mxu0 0.0
  %1392 = vmatprep.subr.mxu0 0.0
  %1393 = vmatpush1.msra.mxu0 0.0
  %1394 = vmatprep.subr.mxu0 0.0
  %1395 = vmatpush1.msra.mxu0 0.0
  %1396 = vmatprep.subr.mxu0 0.0
  %1397 = vmatpush1.msra.mxu0 0.0
  %1398 = vmatprep.subr.mxu0 0.0
  %1399 = vmatpush1.msra.mxu0 0.0
  %1400 = vmatprep.subr.mxu0 0.0
  %1401 = vmatpush1.msra.mxu0 0.0
  %1402 = vmatprep.subr.mxu0 0.0
  %1403 = vmatpush1.msra.mxu0 0.0
  %1404 = vmatprep.subr.mxu0 0.0
  %1405 = vmatpush1.msra.mxu0 0.0
  %1406 = vmatprep.subr.mxu0 0.0
  %1407 = vmatpush1.msra.mxu0 0.0
  %1408 = vmatprep.subr.mxu0 0.0
  %1409 = vmatpush1.msra.mxu0 0.0
  %1410 = vmatprep.subr.mxu0 0.0
  %1411 = vmatpush1.msra.mxu0 0.0
  %1412 = vmatprep.subr.mxu0 0.0
  %1413 = vmatpush1.msra.mxu0 0.0
  %1414 = vmatprep.subr.mxu0 0.0
  %1415 = vmatpush1.msra.mxu0 0.0
  %1416 = vmatprep.subr.mxu0 0.0
  %1417 = vmatpush1.msra.mxu0 0.0
  %1418 = vmatprep.subr.mxu0 0.0
  %1419 = vmatpush1.msra.mxu0 0.0
  %1420 = vmatprep.subr.mxu0 0.0
  %1421 = vmatpush1.msra.mxu0 0.0
  %1422 = vmatprep.subr.mxu0 0.0
  %1423 = vmatpush1.msra.mxu0 0.0
  %1424 = vmatprep.subr.mxu0 0.0
  %1425 = vmatpush1.msra.mxu0 0.0
  %1426 = vmatprep.subr.mxu0 0.0
  %1427 = vmatpush1.msra.mxu0 0.0
  %1428 = vmatprep.subr.mxu0 0.0
  %1429 = vmatpush1.msra.mxu0 0.0
  %1430 = vmatprep.subr.mxu0 0.0
  %1431 = vmatpush1.msra.mxu0 0.0
  %1432 = vmatprep.mubr.f32.mxu0 0.0
  %1433 = vmatmul.mubr.f32.gmra.mrb[0].mxu0 %v1366
  %v1434 = vpop.f32.mrb[0].mxu0
  %v1435 = vadd.f32 0.0, %v1434
  %v1436 = vpop.f32.mrb[0].mxu0
  %1437 = vdwg.mxu0
  %v1438 = vadd.f32 %v1140, %v1435
  %v1439 = vxor.u32 %v1438, 2147483648
  %v1440 = vmul.f32 %v1439, 1.442695
  %v1441 = vpow.pop %v1440
  %v1442 = vadd.f32 %v1441, 1.0
  %v1443 = vrcp.pop %v1442
  %v1444 = vmul.f32 1.0, %v1443
  %v1445 = vtanh.pop %v1438
  %v1446 = vmul.f32 %v1444, %v1356
  %1448 = vrot.lane.b32.xlu0 %v1445, 32
  %v1449 = vpop.permute.xlu0 %1448
  %v1451 = vmul.f32 %v1444, %v1449
  %1453 = vrot.lane.b32.xlu0 %v1451, 32
  %v1454 = vpop.permute.xlu0 %1453
  %v1456 = vadd.f32 %v1446, %v1454
  %v1457 = vtanh.pop %v1456
  %1459 = vrot.lane.b32.xlu0 %v1457, 32
  %v1460 = vpop.permute.xlu0 %1459
  %v1462 = vmul.f32 %v1444, %v1460
  %1464 = vrot.lane.b32.xlu0 %v1462, 64
  %v1465 = vpop.permute.xlu0 %1464
  %v1466 = vsel %vm198, %v1465, 0
  %1468 = vmatprep.subr.mxu0 0.0
  %1469 = vmatpush1.msra.mxu0 %v1028
  %1470 = vmatprep.subr.mxu0 0.0
  %1471 = vmatpush1.msra.mxu0 %v1029
  %1472 = vmatprep.subr.mxu0 0.0
  %1473 = vmatpush1.msra.mxu0 %v1030
  %1474 = vmatprep.subr.mxu0 0.0
  %1475 = vmatpush1.msra.mxu0 %v1031
  %1476 = vmatprep.subr.mxu0 0.0
  %1477 = vmatpush1.msra.mxu0 0.0
  %1478 = vmatprep.subr.mxu0 0.0
  %1479 = vmatpush1.msra.mxu0 0.0
  %1480 = vmatprep.subr.mxu0 0.0
  %1481 = vmatpush1.msra.mxu0 0.0
  %1482 = vmatprep.subr.mxu0 0.0
  %1483 = vmatpush1.msra.mxu0 0.0
  %1484 = vmatprep.subr.mxu0 0.0
  %1485 = vmatpush1.msra.mxu0 0.0
  %1486 = vmatprep.subr.mxu0 0.0
  %1487 = vmatpush1.msra.mxu0 0.0
  %1488 = vmatprep.subr.mxu0 0.0
  %1489 = vmatpush1.msra.mxu0 0.0
  %1490 = vmatprep.subr.mxu0 0.0
  %1491 = vmatpush1.msra.mxu0 0.0
  %1492 = vmatprep.subr.mxu0 0.0
  %1493 = vmatpush1.msra.mxu0 0.0
  %1494 = vmatprep.subr.mxu0 0.0
  %1495 = vmatpush1.msra.mxu0 0.0
  %1496 = vmatprep.subr.mxu0 0.0
  %1497 = vmatpush1.msra.mxu0 0.0
  %1498 = vmatprep.subr.mxu0 0.0
  %1499 = vmatpush1.msra.mxu0 0.0
  %1500 = vmatprep.subr.mxu0 0.0
  %1501 = vmatpush1.msra.mxu0 0.0
  %1502 = vmatprep.subr.mxu0 0.0
  %1503 = vmatpush1.msra.mxu0 0.0
  %1504 = vmatprep.subr.mxu0 0.0
  %1505 = vmatpush1.msra.mxu0 0.0
  %1506 = vmatprep.subr.mxu0 0.0
  %1507 = vmatpush1.msra.mxu0 0.0
  %1508 = vmatprep.subr.mxu0 0.0
  %1509 = vmatpush1.msra.mxu0 0.0
  %1510 = vmatprep.subr.mxu0 0.0
  %1511 = vmatpush1.msra.mxu0 0.0
  %1512 = vmatprep.subr.mxu0 0.0
  %1513 = vmatpush1.msra.mxu0 0.0
  %1514 = vmatprep.subr.mxu0 0.0
  %1515 = vmatpush1.msra.mxu0 0.0
  %1516 = vmatprep.subr.mxu0 0.0
  %1517 = vmatpush1.msra.mxu0 0.0
  %1518 = vmatprep.subr.mxu0 0.0
  %1519 = vmatpush1.msra.mxu0 0.0
  %1520 = vmatprep.subr.mxu0 0.0
  %1521 = vmatpush1.msra.mxu0 0.0
  %1522 = vmatprep.subr.mxu0 0.0
  %1523 = vmatpush1.msra.mxu0 0.0
  %1524 = vmatprep.subr.mxu0 0.0
  %1525 = vmatpush1.msra.mxu0 0.0
  %1526 = vmatprep.subr.mxu0 0.0
  %1527 = vmatpush1.msra.mxu0 0.0
  %1528 = vmatprep.subr.mxu0 0.0
  %1529 = vmatpush1.msra.mxu0 0.0
  %1530 = vmatprep.subr.mxu0 0.0
  %1531 = vmatpush1.msra.mxu0 0.0
  %1532 = vmatprep.mubr.f32.mxu0 0.0
  %1533 = vmatmul.mubr.f32.gmra.mrb[0].mxu0 %v1466
  %v1534 = vpop.f32.mrb[0].mxu0
  %v1535 = vadd.f32 0.0, %v1534
  %v1536 = vpop.f32.mrb[0].mxu0
  %1537 = vdwg.mxu0
  %v1538 = vadd.f32 %v1145, %v1535
  %v1539 = vxor.u32 %v1538, 2147483648
  %v1540 = vmul.f32 %v1539, 1.442695
  %v1541 = vpow.pop %v1540
  %v1542 = vadd.f32 %v1541, 1.0
  %v1543 = vrcp.pop %v1542
  %v1544 = vmul.f32 1.0, %v1543
  %v1545 = vtanh.pop %v1538
  %v1546 = vmul.f32 %v1544, %v1456
  %1548 = vrot.lane.b32.xlu0 %v1545, 32
  %v1549 = vpop.permute.xlu0 %1548
  %v1551 = vmul.f32 %v1544, %v1549
  %1553 = vrot.lane.b32.xlu0 %v1551, 32
  %v1554 = vpop.permute.xlu0 %1553
  %v1556 = vadd.f32 %v1546, %v1554
  %v1557 = vtanh.pop %v1556
  %1559 = vrot.lane.b32.xlu0 %v1557, 32
  %v1560 = vpop.permute.xlu0 %1559
  %v1562 = vmul.f32 %v1544, %v1560
  %1564 = vrot.lane.b32.xlu0 %v1562, 64
  %v1565 = vpop.permute.xlu0 %1564
  %v1566 = vsel %vm198, %v1565, 0
  %1568 = vmatprep.subr.mxu0 0.0
  %1569 = vmatpush1.msra.mxu0 %v1028
  %1570 = vmatprep.subr.mxu0 0.0
  %1571 = vmatpush1.msra.mxu0 %v1029
  %1572 = vmatprep.subr.mxu0 0.0
  %1573 = vmatpush1.msra.mxu0 %v1030
  %1574 = vmatprep.subr.mxu0 0.0
  %1575 = vmatpush1.msra.mxu0 %v1031
  %1576 = vmatprep.subr.mxu0 0.0
  %1577 = vmatpush1.msra.mxu0 0.0
  %1578 = vmatprep.subr.mxu0 0.0
  %1579 = vmatpush1.msra.mxu0 0.0
  %1580 = vmatprep.subr.mxu0 0.0
  %1581 = vmatpush1.msra.mxu0 0.0
  %1582 = vmatprep.subr.mxu0 0.0
  %1583 = vmatpush1.msra.mxu0 0.0
  %1584 = vmatprep.subr.mxu0 0.0
  %1585 = vmatpush1.msra.mxu0 0.0
  %1586 = vmatprep.subr.mxu0 0.0
  %1587 = vmatpush1.msra.mxu0 0.0
  %1588 = vmatprep.subr.mxu0 0.0
  %1589 = vmatpush1.msra.mxu0 0.0
  %1590 = vmatprep.subr.mxu0 0.0
  %1591 = vmatpush1.msra.mxu0 0.0
  %1592 = vmatprep.subr.mxu0 0.0
  %1593 = vmatpush1.msra.mxu0 0.0
  %1594 = vmatprep.subr.mxu0 0.0
  %1595 = vmatpush1.msra.mxu0 0.0
  %1596 = vmatprep.subr.mxu0 0.0
  %1597 = vmatpush1.msra.mxu0 0.0
  %1598 = vmatprep.subr.mxu0 0.0
  %1599 = vmatpush1.msra.mxu0 0.0
  %1600 = vmatprep.subr.mxu0 0.0
  %1601 = vmatpush1.msra.mxu0 0.0
  %1602 = vmatprep.subr.mxu0 0.0
  %1603 = vmatpush1.msra.mxu0 0.0
  %1604 = vmatprep.subr.mxu0 0.0
  %1605 = vmatpush1.msra.mxu0 0.0
  %1606 = vmatprep.subr.mxu0 0.0
  %1607 = vmatpush1.msra.mxu0 0.0
  %1608 = vmatprep.subr.mxu0 0.0
  %1609 = vmatpush1.msra.mxu0 0.0
  %1610 = vmatprep.subr.mxu0 0.0
  %1611 = vmatpush1.msra.mxu0 0.0
  %1612 = vmatprep.subr.mxu0 0.0
  %1613 = vmatpush1.msra.mxu0 0.0
  %1614 = vmatprep.subr.mxu0 0.0
  %1615 = vmatpush1.msra.mxu0 0.0
  %1616 = vmatprep.subr.mxu0 0.0
  %1617 = vmatpush1.msra.mxu0 0.0
  %1618 = vmatprep.subr.mxu0 0.0
  %1619 = vmatpush1.msra.mxu0 0.0
  %1620 = vmatprep.subr.mxu0 0.0
  %1621 = vmatpush1.msra.mxu0 0.0
  %1622 = vmatprep.subr.mxu0 0.0
  %1623 = vmatpush1.msra.mxu0 0.0
  %1624 = vmatprep.subr.mxu0 0.0
  %1625 = vmatpush1.msra.mxu0 0.0
  %1626 = vmatprep.subr.mxu0 0.0
  %1627 = vmatpush1.msra.mxu0 0.0
  %1628 = vmatprep.subr.mxu0 0.0
  %1629 = vmatpush1.msra.mxu0 0.0
  %1630 = vmatprep.subr.mxu0 0.0
  %1631 = vmatpush1.msra.mxu0 0.0
  %1632 = vmatprep.mubr.f32.mxu0 0.0
  %1633 = vmatmul.mubr.f32.gmra.mrb[0].mxu0 %v1566
  %v1634 = vpop.f32.mrb[0].mxu0
  %v1635 = vadd.f32 0.0, %v1634
  %v1636 = vpop.f32.mrb[0].mxu0
  %1637 = vdwg.mxu0
  %v1638 = vadd.f32 %v1150, %v1635
  %v1639 = vxor.u32 %v1638, 2147483648
  %v1640 = vmul.f32 %v1639, 1.442695
  %v1641 = vpow.pop %v1640
  %v1642 = vadd.f32 %v1641, 1.0
  %v1643 = vrcp.pop %v1642
  %v1644 = vmul.f32 1.0, %v1643
  %v1645 = vtanh.pop %v1638
  %v1646 = vmul.f32 %v1644, %v1556
  %1648 = vrot.lane.b32.xlu0 %v1645, 32
  %v1649 = vpop.permute.xlu0 %1648
  %v1651 = vmul.f32 %v1644, %v1649
  %1653 = vrot.lane.b32.xlu0 %v1651, 32
  %v1654 = vpop.permute.xlu0 %1653
  %v1656 = vadd.f32 %v1646, %v1654
  %v1657 = vtanh.pop %v1656
  %1659 = vrot.lane.b32.xlu0 %v1657, 32
  %v1660 = vpop.permute.xlu0 %1659
  %v1662 = vmul.f32 %v1644, %v1660
  %1664 = vrot.lane.b32.xlu0 %v1662, 64
  %v1665 = vpop.permute.xlu0 %1664
  %v1666 = vsel %vm198, %v1665, 0
  %1668 = vmatprep.subr.mxu0 0.0
  %1669 = vmatpush1.msra.mxu0 %v1028
  %1670 = vmatprep.subr.mxu0 0.0
  %1671 = vmatpush1.msra.mxu0 %v1029
  %1672 = vmatprep.subr.mxu0 0.0
  %1673 = vmatpush1.msra.mxu0 %v1030
  %1674 = vmatprep.subr.mxu0 0.0
  %1675 = vmatpush1.msra.mxu0 %v1031
  %1676 = vmatprep.subr.mxu0 0.0
  %1677 = vmatpush1.msra.mxu0 0.0
  %1678 = vmatprep.subr.mxu0 0.0
  %1679 = vmatpush1.msra.mxu0 0.0
  %1680 = vmatprep.subr.mxu0 0.0
  %1681 = vmatpush1.msra.mxu0 0.0
  %1682 = vmatprep.subr.mxu0 0.0
  %1683 = vmatpush1.msra.mxu0 0.0
  %1684 = vmatprep.subr.mxu0 0.0
  %1685 = vmatpush1.msra.mxu0 0.0
  %1686 = vmatprep.subr.mxu0 0.0
  %1687 = vmatpush1.msra.mxu0 0.0
  %1688 = vmatprep.subr.mxu0 0.0
  %1689 = vmatpush1.msra.mxu0 0.0
  %1690 = vmatprep.subr.mxu0 0.0
  %1691 = vmatpush1.msra.mxu0 0.0
  %1692 = vmatprep.subr.mxu0 0.0
  %1693 = vmatpush1.msra.mxu0 0.0
  %1694 = vmatprep.subr.mxu0 0.0
  %1695 = vmatpush1.msra.mxu0 0.0
  %1696 = vmatprep.subr.mxu0 0.0
  %1697 = vmatpush1.msra.mxu0 0.0
  %1698 = vmatprep.subr.mxu0 0.0
  %1699 = vmatpush1.msra.mxu0 0.0
  %1700 = vmatprep.subr.mxu0 0.0
  %1701 = vmatpush1.msra.mxu0 0.0
  %1702 = vmatprep.subr.mxu0 0.0
  %1703 = vmatpush1.msra.mxu0 0.0
  %1704 = vmatprep.subr.mxu0 0.0
  %1705 = vmatpush1.msra.mxu0 0.0
  %1706 = vmatprep.subr.mxu0 0.0
  %1707 = vmatpush1.msra.mxu0 0.0
  %1708 = vmatprep.subr.mxu0 0.0
  %1709 = vmatpush1.msra.mxu0 0.0
  %1710 = vmatprep.subr.mxu0 0.0
  %1711 = vmatpush1.msra.mxu0 0.0
  %1712 = vmatprep.subr.mxu0 0.0
  %1713 = vmatpush1.msra.mxu0 0.0
  %1714 = vmatprep.subr.mxu0 0.0
  %1715 = vmatpush1.msra.mxu0 0.0
  %1716 = vmatprep.subr.mxu0 0.0
  %1717 = vmatpush1.msra.mxu0 0.0
  %1718 = vmatprep.subr.mxu0 0.0
  %1719 = vmatpush1.msra.mxu0 0.0
  %1720 = vmatprep.subr.mxu0 0.0
  %1721 = vmatpush1.msra.mxu0 0.0
  %1722 = vmatprep.subr.mxu0 0.0
  %1723 = vmatpush1.msra.mxu0 0.0
  %1724 = vmatprep.subr.mxu0 0.0
  %1725 = vmatpush1.msra.mxu0 0.0
  %1726 = vmatprep.subr.mxu0 0.0
  %1727 = vmatpush1.msra.mxu0 0.0
  %1728 = vmatprep.subr.mxu0 0.0
  %1729 = vmatpush1.msra.mxu0 0.0
  %1730 = vmatprep.subr.mxu0 0.0
  %1731 = vmatpush1.msra.mxu0 0.0
  %1732 = vmatprep.mubr.f32.mxu0 0.0
  %1733 = vmatmul.mubr.f32.gmra.mrb[0].mxu0 %v1666
  %v1734 = vpop.f32.mrb[0].mxu0
  %v1735 = vadd.f32 0.0, %v1734
  %v1736 = vpop.f32.mrb[0].mxu0
  %1737 = vdwg.mxu0
  %v1738 = vadd.f32 %v1155, %v1735
  %v1739 = vxor.u32 %v1738, 2147483648
  %v1740 = vmul.f32 %v1739, 1.442695
  %v1741 = vpow.pop %v1740
  %v1742 = vadd.f32 %v1741, 1.0
  %v1743 = vrcp.pop %v1742
  %v1744 = vmul.f32 1.0, %v1743
  %v1745 = vtanh.pop %v1738
  %v1746 = vmul.f32 %v1744, %v1656
  %1748 = vrot.lane.b32.xlu0 %v1745, 32
  %v1749 = vpop.permute.xlu0 %1748
  %v1751 = vmul.f32 %v1744, %v1749
  %1753 = vrot.lane.b32.xlu0 %v1751, 32
  %v1754 = vpop.permute.xlu0 %1753
  %v1756 = vadd.f32 %v1746, %v1754
  %v1757 = vtanh.pop %v1756
  %1759 = vrot.lane.b32.xlu0 %v1757, 32
  %v1760 = vpop.permute.xlu0 %1759
  %v1762 = vmul.f32 %v1744, %v1760
  %1764 = vrot.lane.b32.xlu0 %v1762, 64
  %v1765 = vpop.permute.xlu0 %1764
  %v1766 = vsel %vm198, %v1765, 0
  %1768 = vmatprep.subr.mxu0 0.0
  %1769 = vmatpush1.msra.mxu0 %v1028
  %1770 = vmatprep.subr.mxu0 0.0
  %1771 = vmatpush1.msra.mxu0 %v1029
  %1772 = vmatprep.subr.mxu0 0.0
  %1773 = vmatpush1.msra.mxu0 %v1030
  %1774 = vmatprep.subr.mxu0 0.0
  %1775 = vmatpush1.msra.mxu0 %v1031
  %1776 = vmatprep.subr.mxu0 0.0
  %1777 = vmatpush1.msra.mxu0 0.0
  %1778 = vmatprep.subr.mxu0 0.0
  %1779 = vmatpush1.msra.mxu0 0.0
  %1780 = vmatprep.subr.mxu0 0.0
  %1781 = vmatpush1.msra.mxu0 0.0
  %1782 = vmatprep.subr.mxu0 0.0
  %1783 = vmatpush1.msra.mxu0 0.0
  %1784 = vmatprep.subr.mxu0 0.0
  %1785 = vmatpush1.msra.mxu0 0.0
  %1786 = vmatprep.subr.mxu0 0.0
  %1787 = vmatpush1.msra.mxu0 0.0
  %1788 = vmatprep.subr.mxu0 0.0
  %1789 = vmatpush1.msra.mxu0 0.0
  %1790 = vmatprep.subr.mxu0 0.0
  %1791 = vmatpush1.msra.mxu0 0.0
  %1792 = vmatprep.subr.mxu0 0.0
  %1793 = vmatpush1.msra.mxu0 0.0
  %1794 = vmatprep.subr.mxu0 0.0
  %1795 = vmatpush1.msra.mxu0 0.0
  %1796 = vmatprep.subr.mxu0 0.0
  %1797 = vmatpush1.msra.mxu0 0.0
  %1798 = vmatprep.subr.mxu0 0.0
  %1799 = vmatpush1.msra.mxu0 0.0
  %1800 = vmatprep.subr.mxu0 0.0
  %1801 = vmatpush1.msra.mxu0 0.0
  %1802 = vmatprep.subr.mxu0 0.0
  %1803 = vmatpush1.msra.mxu0 0.0
  %1804 = vmatprep.subr.mxu0 0.0
  %1805 = vmatpush1.msra.mxu0 0.0
  %1806 = vmatprep.subr.mxu0 0.0
  %1807 = vmatpush1.msra.mxu0 0.0
  %1808 = vmatprep.subr.mxu0 0.0
  %1809 = vmatpush1.msra.mxu0 0.0
  %1810 = vmatprep.subr.mxu0 0.0
  %1811 = vmatpush1.msra.mxu0 0.0
  %1812 = vmatprep.subr.mxu0 0.0
  %1813 = vmatpush1.msra.mxu0 0.0
  %1814 = vmatprep.subr.mxu0 0.0
  %1815 = vmatpush1.msra.mxu0 0.0
  %1816 = vmatprep.subr.mxu0 0.0
  %1817 = vmatpush1.msra.mxu0 0.0
  %1818 = vmatprep.subr.mxu0 0.0
  %1819 = vmatpush1.msra.mxu0 0.0
  %1820 = vmatprep.subr.mxu0 0.0
  %1821 = vmatpush1.msra.mxu0 0.0
  %1822 = vmatprep.subr.mxu0 0.0
  %1823 = vmatpush1.msra.mxu0 0.0
  %1824 = vmatprep.subr.mxu0 0.0
  %1825 = vmatpush1.msra.mxu0 0.0
  %1826 = vmatprep.subr.mxu0 0.0
  %1827 = vmatpush1.msra.mxu0 0.0
  %1828 = vmatprep.subr.mxu0 0.0
  %1829 = vmatpush1.msra.mxu0 0.0
  %1830 = vmatprep.subr.mxu0 0.0
  %1831 = vmatpush1.msra.mxu0 0.0
  %1832 = vmatprep.mubr.f32.mxu0 0.0
  %1833 = vmatmul.mubr.f32.gmra.mrb[0].mxu0 %v1766
  %v1834 = vpop.f32.mrb[0].mxu0
  %v1835 = vadd.f32 0.0, %v1834
  %v1836 = vpop.f32.mrb[0].mxu0
  %1837 = vdwg.mxu0
  %v1838 = vadd.f32 %v1160, %v1835
  %v1839 = vxor.u32 %v1838, 2147483648
  %v1840 = vmul.f32 %v1839, 1.442695
  %v1841 = vpow.pop %v1840
  %v1842 = vadd.f32 %v1841, 1.0
  %v1843 = vrcp.pop %v1842
  %v1844 = vmul.f32 1.0, %v1843
  %v1845 = vtanh.pop %v1838
  %v1846 = vmul.f32 %v1844, %v1756
  %1848 = vrot.lane.b32.xlu0 %v1845, 32
  %v1849 = vpop.permute.xlu0 %1848
  %v1851 = vmul.f32 %v1844, %v1849
  %1853 = vrot.lane.b32.xlu0 %v1851, 32
  %v1854 = vpop.permute.xlu0 %1853
  %v1856 = vadd.f32 %v1846, %v1854
  %v1857 = vtanh.pop %v1856
  %1859 = vrot.lane.b32.xlu0 %v1857, 32
  %v1860 = vpop.permute.xlu0 %1859
  %v1862 = vmul.f32 %v1844, %v1860
  %1864 = vrot.lane.b32.xlu0 %v1862, 64
  %v1865 = vpop.permute.xlu0 %1864
  %v1866 = vsel %vm198, %v1865, 0
  %1868 = vmatprep.subr.mxu0 0.0
  %1869 = vmatpush1.msra.mxu0 %v1028
  %1870 = vmatprep.subr.mxu0 0.0
  %1871 = vmatpush1.msra.mxu0 %v1029
  %1872 = vmatprep.subr.mxu0 0.0
  %1873 = vmatpush1.msra.mxu0 %v1030
  %1874 = vmatprep.subr.mxu0 0.0
  %1875 = vmatpush1.msra.mxu0 %v1031
  %1876 = vmatprep.subr.mxu0 0.0
  %1877 = vmatpush1.msra.mxu0 0.0
  %1878 = vmatprep.subr.mxu0 0.0
  %1879 = vmatpush1.msra.mxu0 0.0
  %1880 = vmatprep.subr.mxu0 0.0
  %1881 = vmatpush1.msra.mxu0 0.0
  %1882 = vmatprep.subr.mxu0 0.0
  %1883 = vmatpush1.msra.mxu0 0.0
  %1884 = vmatprep.subr.mxu0 0.0
  %1885 = vmatpush1.msra.mxu0 0.0
  %1886 = vmatprep.subr.mxu0 0.0
  %1887 = vmatpush1.msra.mxu0 0.0
  %1888 = vmatprep.subr.mxu0 0.0
  %1889 = vmatpush1.msra.mxu0 0.0
  %1890 = vmatprep.subr.mxu0 0.0
  %1891 = vmatpush1.msra.mxu0 0.0
  %1892 = vmatprep.subr.mxu0 0.0
  %1893 = vmatpush1.msra.mxu0 0.0
  %1894 = vmatprep.subr.mxu0 0.0
  %1895 = vmatpush1.msra.mxu0 0.0
  %1896 = vmatprep.subr.mxu0 0.0
  %1897 = vmatpush1.msra.mxu0 0.0
  %1898 = vmatprep.subr.mxu0 0.0
  %1899 = vmatpush1.msra.mxu0 0.0
  %1900 = vmatprep.subr.mxu0 0.0
  %1901 = vmatpush1.msra.mxu0 0.0
  %1902 = vmatprep.subr.mxu0 0.0
  %1903 = vmatpush1.msra.mxu0 0.0
  %1904 = vmatprep.subr.mxu0 0.0
  %1905 = vmatpush1.msra.mxu0 0.0
  %1906 = vmatprep.subr.mxu0 0.0
  %1907 = vmatpush1.msra.mxu0 0.0
  %1908 = vmatprep.subr.mxu0 0.0
  %1909 = vmatpush1.msra.mxu0 0.0
  %1910 = vmatprep.subr.mxu0 0.0
  %1911 = vmatpush1.msra.mxu0 0.0
  %1912 = vmatprep.subr.mxu0 0.0
  %1913 = vmatpush1.msra.mxu0 0.0
  %1914 = vmatprep.subr.mxu0 0.0
  %1915 = vmatpush1.msra.mxu0 0.0
  %1916 = vmatprep.subr.mxu0 0.0
  %1917 = vmatpush1.msra.mxu0 0.0
  %1918 = vmatprep.subr.mxu0 0.0
  %1919 = vmatpush1.msra.mxu0 0.0
  %1920 = vmatprep.subr.mxu0 0.0
  %1921 = vmatpush1.msra.mxu0 0.0
  %1922 = vmatprep.subr.mxu0 0.0
  %1923 = vmatpush1.msra.mxu0 0.0
  %1924 = vmatprep.subr.mxu0 0.0
  %1925 = vmatpush1.msra.mxu0 0.0
  %1926 = vmatprep.subr.mxu0 0.0
  %1927 = vmatpush1.msra.mxu0 0.0
  %1928 = vmatprep.subr.mxu0 0.0
  %1929 = vmatpush1.msra.mxu0 0.0
  %1930 = vmatprep.subr.mxu0 0.0
  %1931 = vmatpush1.msra.mxu0 0.0
  %1932 = vmatprep.mubr.f32.mxu0 0.0
  %1933 = vmatmul.mubr.f32.gmra.mrb[0].mxu0 %v1866
  %v1934 = vpop.f32.mrb[0].mxu0
  %v1935 = vadd.f32 0.0, %v1934
  %v1936 = vpop.f32.mrb[0].mxu0
  %1937 = vdwg.mxu0
  %v1938 = vadd.f32 %v1165, %v1935
  %v1939 = vxor.u32 %v1938, 2147483648
  %v1940 = vmul.f32 %v1939, 1.442695
  %v1941 = vpow.pop %v1940
  %v1942 = vadd.f32 %v1941, 1.0
  %v1943 = vrcp.pop %v1942
  %v1944 = vmul.f32 1.0, %v1943
  %v1945 = vtanh.pop %v1938
  %v1946 = vmul.f32 %v1944, %v1856
  %1948 = vrot.lane.b32.xlu0 %v1945, 32
  %v1949 = vpop.permute.xlu0 %1948
  %v1951 = vmul.f32 %v1944, %v1949
  %1953 = vrot.lane.b32.xlu0 %v1951, 32
  %v1954 = vpop.permute.xlu0 %1953
  %v1956 = vadd.f32 %v1946, %v1954
  %v1957 = vtanh.pop %v1956
  %1959 = vrot.lane.b32.xlu0 %v1957, 32
  %v1960 = vpop.permute.xlu0 %1959
  %v1962 = vmul.f32 %v1944, %v1960
  %v1963 = vld [vmem:[%s7] sm:$0xff]
  %v1964 = vld [vmem:[%s7 + $0x8] sm:$0xff]
  %v1965 = vld [vmem:[%s7 + $0x10] sm:$0xff]
  %v1966 = vld [vmem:[%s7 + $0x18] sm:$0xff]
  %v1967 = vld [vmem:[%s8] sm:$0x1]
  %v1969 = vlaneseq
  %v1970 = vshrl.u32 %v1969, 7
  %v1971 = vsub.s32 0, %v1970
  %v1972 = vrot.slane %v1967, %v1971
  %1975 = vrot.lane.b32.xlu0 %v1962, 64
  %v1976 = vpop.permute.xlu0 %1975
  %v1977 = vsel %vm198, %v1976, 0
  %1979 = vmatprep.subr.mxu0 0.0
  %1980 = vmatpush1.msra.mxu0 %v1963
  %1981 = vmatprep.subr.mxu0 0.0
  %1982 = vmatpush1.msra.mxu0 %v1964
  %1983 = vmatprep.subr.mxu0 0.0
  %1984 = vmatpush1.msra.mxu0 %v1965
  %1985 = vmatprep.subr.mxu0 0.0
  %1986 = vmatpush1.msra.mxu0 %v1966
  %1987 = vmatprep.subr.mxu0 0.0
  %1988 = vmatpush1.msra.mxu0 0.0
  %1989 = vmatprep.subr.mxu0 0.0
  %1990 = vmatpush1.msra.mxu0 0.0
  %1991 = vmatprep.subr.mxu0 0.0
  %1992 = vmatpush1.msra.mxu0 0.0
  %1993 = vmatprep.subr.mxu0 0.0
  %1994 = vmatpush1.msra.mxu0 0.0
  %1995 = vmatprep.subr.mxu0 0.0
  %1996 = vmatpush1.msra.mxu0 0.0
  %1997 = vmatprep.subr.mxu0 0.0
  %1998 = vmatpush1.msra.mxu0 0.0
  %1999 = vmatprep.subr.mxu0 0.0
  %2000 = vmatpush1.msra.mxu0 0.0
  %2001 = vmatprep.subr.mxu0 0.0
  %2002 = vmatpush1.msra.mxu0 0.0
  %2003 = vmatprep.subr.mxu0 0.0
  %2004 = vmatpush1.msra.mxu0 0.0
  %2005 = vmatprep.subr.mxu0 0.0
  %2006 = vmatpush1.msra.mxu0 0.0
  %2007 = vmatprep.subr.mxu0 0.0
  %2008 = vmatpush1.msra.mxu0 0.0
  %2009 = vmatprep.subr.mxu0 0.0
  %2010 = vmatpush1.msra.mxu0 0.0
  %2011 = vmatprep.subr.mxu0 0.0
  %2012 = vmatpush1.msra.mxu0 0.0
  %2013 = vmatprep.subr.mxu0 0.0
  %2014 = vmatpush1.msra.mxu0 0.0
  %2015 = vmatprep.subr.mxu0 0.0
  %2016 = vmatpush1.msra.mxu0 0.0
  %2017 = vmatprep.subr.mxu0 0.0
  %2018 = vmatpush1.msra.mxu0 0.0
  %2019 = vmatprep.subr.mxu0 0.0
  %2020 = vmatpush1.msra.mxu0 0.0
  %2021 = vmatprep.subr.mxu0 0.0
  %2022 = vmatpush1.msra.mxu0 0.0
  %2023 = vmatprep.subr.mxu0 0.0
  %2024 = vmatpush1.msra.mxu0 0.0
  %2025 = vmatprep.subr.mxu0 0.0
  %2026 = vmatpush1.msra.mxu0 0.0
  %2027 = vmatprep.subr.mxu0 0.0
  %2028 = vmatpush1.msra.mxu0 0.0
  %2029 = vmatprep.subr.mxu0 0.0
  %2030 = vmatpush1.msra.mxu0 0.0
  %2031 = vmatprep.subr.mxu0 0.0
  %2032 = vmatpush1.msra.mxu0 0.0
  %2033 = vmatprep.subr.mxu0 0.0
  %2034 = vmatpush1.msra.mxu0 0.0
  %2035 = vmatprep.subr.mxu0 0.0
  %2036 = vmatpush1.msra.mxu0 0.0
  %2037 = vmatprep.subr.mxu0 0.0
  %2038 = vmatpush1.msra.mxu0 0.0
  %2039 = vmatprep.subr.mxu0 0.0
  %2040 = vmatpush1.msra.mxu0 0.0
  %2041 = vmatprep.subr.mxu0 0.0
  %2042 = vmatpush1.msra.mxu0 0.0
  %2043 = vmatprep.mubr.f32.mxu0 0.0
  %2044 = vmatmul.mubr.f32.gmra.mrb[0].mxu0 %v1977
  %v2045 = vpop.f32.mrb[0].mxu0
  %v2046 = vadd.f32 %v1972, %v2045
  %v2047 = vpop.f32.mrb[0].mxu0
  %2048 = vdwg.mxu0
  %v2049 = vtanh.pop %v2046
  %v2050 = vld [vmem:[%s9] sm:$0xff]
  %v2051 = vld [vmem:[%s10] sm:$0x1]
  %v2053 = vlaneseq
  %v2054 = vshrl.u32 %v2053, 7
  %v2055 = vsub.s32 0, %v2054
  %v2056 = vrot.slane %v2051, %v2055
  %vm2058 = vcmask 64512
  %v2060 = vsel %vm2058, %v2049, 0
  %2062 = vmatprep.subr.mxu0 0.0
  %2063 = vmatpush1.msra.mxu0 %v2050
  %2064 = vmatprep.subr.mxu0 0.0
  %2065 = vmatpush1.msra.mxu0 0.0
  %2066 = vmatprep.subr.mxu0 0.0
  %2067 = vmatpush1.msra.mxu0 0.0
  %2068 = vmatprep.subr.mxu0 0.0
  %2069 = vmatpush1.msra.mxu0 0.0
  %2070 = vmatprep.subr.mxu0 0.0
  %2071 = vmatpush1.msra.mxu0 0.0
  %2072 = vmatprep.subr.mxu0 0.0
  %2073 = vmatpush1.msra.mxu0 0.0
  %2074 = vmatprep.subr.mxu0 0.0
  %2075 = vmatpush1.msra.mxu0 0.0
  %2076 = vmatprep.subr.mxu0 0.0
  %2077 = vmatpush1.msra.mxu0 0.0
  %2078 = vmatprep.subr.mxu0 0.0
  %2079 = vmatpush1.msra.mxu0 0.0
  %2080 = vmatprep.subr.mxu0 0.0
  %2081 = vmatpush1.msra.mxu0 0.0
  %2082 = vmatprep.subr.mxu0 0.0
  %2083 = vmatpush1.msra.mxu0 0.0
  %2084 = vmatprep.subr.mxu0 0.0
  %2085 = vmatpush1.msra.mxu0 0.0
  %2086 = vmatprep.subr.mxu0 0.0
  %2087 = vmatpush1.msra.mxu0 0.0
  %2088 = vmatprep.subr.mxu0 0.0
  %2089 = vmatpush1.msra.mxu0 0.0
  %2090 = vmatprep.subr.mxu0 0.0
  %2091 = vmatpush1.msra.mxu0 0.0
  %2092 = vmatprep.subr.mxu0 0.0
  %2093 = vmatpush1.msra.mxu0 0.0
  %2094 = vmatprep.subr.mxu0 0.0
  %2095 = vmatpush1.msra.mxu0 0.0
  %2096 = vmatprep.subr.mxu0 0.0
  %2097 = vmatpush1.msra.mxu0 0.0
  %2098 = vmatprep.subr.mxu0 0.0
  %2099 = vmatpush1.msra.mxu0 0.0
  %2100 = vmatprep.subr.mxu0 0.0
  %2101 = vmatpush1.msra.mxu0 0.0
  %2102 = vmatprep.subr.mxu0 0.0
  %2103 = vmatpush1.msra.mxu0 0.0
  %2104 = vmatprep.subr.mxu0 0.0
  %2105 = vmatpush1.msra.mxu0 0.0
  %2106 = vmatprep.subr.mxu0 0.0
  %2107 = vmatpush1.msra.mxu0 0.0
  %2108 = vmatprep.subr.mxu0 0.0
  %2109 = vmatpush1.msra.mxu0 0.0
  %2110 = vmatprep.subr.mxu0 0.0
  %2111 = vmatpush1.msra.mxu0 0.0
  %2112 = vmatprep.subr.mxu0 0.0
  %2113 = vmatpush1.msra.mxu0 0.0
  %2114 = vmatprep.subr.mxu0 0.0
  %2115 = vmatpush1.msra.mxu0 0.0
  %2116 = vmatprep.subr.mxu0 0.0
  %2117 = vmatpush1.msra.mxu0 0.0
  %2118 = vmatprep.subr.mxu0 0.0
  %2119 = vmatpush1.msra.mxu0 0.0
  %2120 = vmatprep.subr.mxu0 0.0
  %2121 = vmatpush1.msra.mxu0 0.0
  %2122 = vmatprep.subr.mxu0 0.0
  %2123 = vmatpush1.msra.mxu0 0.0
  %2124 = vmatprep.subr.mxu0 0.0
  %2125 = vmatpush1.msra.mxu0 0.0
  %2126 = vmatprep.mubr.f32.mxu0 0.0
  %2127 = vmatmul.mubr.f32.gmra.mrb[0].mxu0 %v2060
  %v2128 = vpop.f32.mrb[0].mxu0
  %v2129 = vadd.f32 %v2056, %v2128
  %v2130 = vpop.f32.mrb[0].mxu0
  %2131 = vdwg.mxu0
  %v2132 = vtanh.pop %v2129
  %v2133 = vld [vmem:[%s11] sm:$0xff]
  %v2134 = vld [vmem:[%s12] sm:$0x1]
  %v2136 = vlaneseq
  %v2137 = vshrl.u32 %v2136, 7
  %v2138 = vsub.s32 0, %v2137
  %v2139 = vrot.slane %v2134, %v2138
  %v2142 = vsel %vm2058, %v2132, 0
  %2144 = vmatprep.subr.mxu0 0.0
  %2145 = vmatpush1.msra.mxu0 %v2133
  %2146 = vmatprep.subr.mxu0 0.0
  %2147 = vmatpush1.msra.mxu0 0.0
  %2148 = vmatprep.subr.mxu0 0.0
  %2149 = vmatpush1.msra.mxu0 0.0
  %2150 = vmatprep.subr.mxu0 0.0
  %2151 = vmatpush1.msra.mxu0 0.0
  %2152 = vmatprep.subr.mxu0 0.0
  %2153 = vmatpush1.msra.mxu0 0.0
  %2154 = vmatprep.subr.mxu0 0.0
  %2155 = vmatpush1.msra.mxu0 0.0
  %2156 = vmatprep.subr.mxu0 0.0
  %2157 = vmatpush1.msra.mxu0 0.0
  %2158 = vmatprep.subr.mxu0 0.0
  %2159 = vmatpush1.msra.mxu0 0.0
  %2160 = vmatprep.subr.mxu0 0.0
  %2161 = vmatpush1.msra.mxu0 0.0
  %2162 = vmatprep.subr.mxu0 0.0
  %2163 = vmatpush1.msra.mxu0 0.0
  %2164 = vmatprep.subr.mxu0 0.0
  %2165 = vmatpush1.msra.mxu0 0.0
  %2166 = vmatprep.subr.mxu0 0.0
  %2167 = vmatpush1.msra.mxu0 0.0
  %2168 = vmatprep.subr.mxu0 0.0
  %2169 = vmatpush1.msra.mxu0 0.0
  %2170 = vmatprep.subr.mxu0 0.0
  %2171 = vmatpush1.msra.mxu0 0.0
  %2172 = vmatprep.subr.mxu0 0.0
  %2173 = vmatpush1.msra.mxu0 0.0
  %2174 = vmatprep.subr.mxu0 0.0
  %2175 = vmatpush1.msra.mxu0 0.0
  %2176 = vmatprep.subr.mxu0 0.0
  %2177 = vmatpush1.msra.mxu0 0.0
  %2178 = vmatprep.subr.mxu0 0.0
  %2179 = vmatpush1.msra.mxu0 0.0
  %2180 = vmatprep.subr.mxu0 0.0
  %2181 = vmatpush1.msra.mxu0 0.0
  %2182 = vmatprep.subr.mxu0 0.0
  %2183 = vmatpush1.msra.mxu0 0.0
  %2184 = vmatprep.subr.mxu0 0.0
  %2185 = vmatpush1.msra.mxu0 0.0
  %2186 = vmatprep.subr.mxu0 0.0
  %2187 = vmatpush1.msra.mxu0 0.0
  %2188 = vmatprep.subr.mxu0 0.0
  %2189 = vmatpush1.msra.mxu0 0.0
  %2190 = vmatprep.subr.mxu0 0.0
  %2191 = vmatpush1.msra.mxu0 0.0
  %2192 = vmatprep.subr.mxu0 0.0
  %2193 = vmatpush1.msra.mxu0 0.0
  %2194 = vmatprep.subr.mxu0 0.0
  %2195 = vmatpush1.msra.mxu0 0.0
  %2196 = vmatprep.subr.mxu0 0.0
  %2197 = vmatpush1.msra.mxu0 0.0
  %2198 = vmatprep.subr.mxu0 0.0
  %2199 = vmatpush1.msra.mxu0 0.0
  %2200 = vmatprep.subr.mxu0 0.0
  %2201 = vmatpush1.msra.mxu0 0.0
  %2202 = vmatprep.subr.mxu0 0.0
  %2203 = vmatpush1.msra.mxu0 0.0
  %2204 = vmatprep.subr.mxu0 0.0
  %2205 = vmatpush1.msra.mxu0 0.0
  %2206 = vmatprep.subr.mxu0 0.0
  %2207 = vmatpush1.msra.mxu0 0.0
  %2208 = vmatprep.mubr.f32.mxu0 0.0
  %2209 = vmatmul.mubr.f32.gmra.mrb[0].mxu0 %v2142
  %v2210 = vpop.f32.mrb[0].mxu0
  %v2211 = vadd.f32 %v2139, %v2210
  %v2212 = vpop.f32.mrb[0].mxu0
  %2213 = vdwg.mxu0
  %v2214 = vtanh.pop %v2211
  %2215 = vst.msk [vmem:[%s13] sm:$0xff] %vm2058, %v2214
  // Predicated region
  $region54: #{deep_mtl_tsmom_forward.1} parent=0 // pred_check
    _
  $region55: #{deep_mtl_tsmom_forward.1} parent=0 // pred_check_branch
    %2217 = sbr.rel (0) target = $region57
  $region56: #{deep_mtl_tsmom_forward.1} parent=0 // pred_region
    _
  $region57: #{deep_mtl_tsmom_forward.1} parent=0 // pred_fallthru
    _
  // Predicated region
  $region58: #{deep_mtl_tsmom_forward.1} parent=0 // pred_check
    _
  $region59: #{deep_mtl_tsmom_forward.1} parent=0 // pred_check_branch
    %2219 = sbr.rel (0) target = $region61
  $region60: #{deep_mtl_tsmom_forward.1} parent=0 // pred_region
    _
  $region61: #{deep_mtl_tsmom_forward.1} parent=0 // pred_fallthru
    _

</llo_original>
